<compile_context>
chip_gen: v7x
topology: tpu7x:2x2x1
jax: 0.10.0
libtpu: 0.0.40
codegen_flags: <defaults>
</compile_context>

<pallas_src>
import jax
import jax.numpy as jnp
import numpy as np
from jax import lax
from jax.experimental import pallas as pl
from jax.experimental.pallas import tpu as pltpu  # noqa: F401  (TPU-specific tuning hooks)


def _fdiv(x, d):
    """floor(x / d) for non-negative integer-valued f32 x.

    Division-free (mul + floor on the VPU) so we never rely on vector integer
    div/rem lowering; the +0.5 keeps the floor robust for any positive int d.
    """
    return jnp.floor((x + 0.5) * (1.0 / float(d)))


# ----------------------------------------------------------------------------
# The single fused kernel
# ----------------------------------------------------------------------------
def _make_fused_kernel(N, L, K, layer_meta, C_last):
    M = 2 * N * L            # rows = (direction, batch, time) flattened
    MF = 2 * L * C_last      # flattened feature width fed to the Linear

    def kernel(x_ref, *refs):
        out_ref = refs[-1]
        layer_refs = refs[: len(layer_meta)]
        lin_ref = refs[len(layer_meta)]
        f32 = jnp.float32

        # Per-row indices (built once from iota; reused by every layer).
        m_col = lax.broadcasted_iota(jnp.int32, (M, 1), 0).astype(f32)   # row id m
        t_col = m_col - _fdiv(m_col, L) * L                              # time t within segment
        dir_col = _fdiv(m_col, N * L)                                    # direction of row m

        def shifted(hin, s):
            """Causal time shift by s within each length-L segment: out[t] = hin[t-s], 0 for t<s."""
            if s == 0:
                return hin
            if s >= L:                       # whole window out of range -> all zeros
                return jnp.zeros_like(hin)
            zpad = jnp.zeros((s, hin.shape[1]), hin.dtype)
            rolled = jnp.concatenate([zpad, hin[: M - s, :]], axis=0)    # rows move down by s
            return jnp.where(t_col >= float(s), rolled, 0.0)             # kill cross-segment leakage

        def causal_conv(hin, w_packed, b_row, dil):
            """Dilated causal conv as ONE MXU matmul (taps lane-concatenated vs packed weights)."""
            taps = [shifted(hin, (K - 1 - k) * dil) for k in range(K)]
            hcat = taps[0] if K == 1 else jnp.concatenate(taps, axis=1)  # (M, K*C_in)
            return jnp.dot(hcat, w_packed, preferred_element_type=f32) + b_row

        # ---- stacked TemporalBlocks, activations stay resident in vregs ----
        h = x_ref[...]                                                   # (M, C_in0), both directions
        for meta, lref in zip(layer_meta, layer_refs):
            c_in, c_out, dil = meta["c_in"], meta["c_out"], meta["dil"]
            r = 0
            w1 = lref[r:r + K * c_in, :];  r += K * c_in
            b1 = lref[r:r + 1, :];         r += 1
            w2 = lref[r:r + K * c_out, :]; r += K * c_out
            b2 = lref[r:r + 1, :];         r += 1
            # conv1 -> ReLU -> (dropout=id) -> conv2 -> ReLU -> (dropout=id)
            h1 = jnp.maximum(causal_conv(h, w1, b1, dil), 0.0)
            h2 = jnp.maximum(causal_conv(h1, w2, b2, dil), 0.0)
            if meta["has_down"]:
                wd = lref[r:r + c_in, :];  r += c_in
                bd = lref[r:r + 1, :];     r += 1
                res = jnp.dot(h, wd, preferred_element_type=f32) + bd
            else:
                res = h
            h = jnp.maximum(h2 + res, 0.0)                               # (M, c_out)

        # ---- fused Linear epilogue ----
        # Lane-expand h (M, C_last) to (M, 2*L*C_last) by log-tree concat, mask it so
        # lane-block j = dir*L + t keeps only rows with matching (dir, t), then one
        # selection matmul builds y_flat (N, 2*L*C_last) in PyTorch NCW flatten order
        # (weight permutation folded at pack time), and one matmul applies the Linear.
        z = h
        reps, cur = 2 * L, 1
        while cur * 2 <= reps:
            z = jnp.concatenate([z, z], axis=1)
            cur *= 2
        if cur < reps:                                                   # (non power-of-2 L only)
            z = jnp.concatenate([z, z[:, : (reps - cur) * C_last]], axis=1)

        q_col = dir_col * L + t_col                                      # (M, 1):  dir*L + t of row m
        f_row = lax.broadcasted_iota(jnp.int32, (1, MF), 1).astype(f32)  # (1, MF): flat feature id
        j_row = _fdiv(f_row, C_last)                                     # lane-block index of f
        z = jnp.where(q_col == j_row, z, 0.0)                            # keep only matching (dir, t)

        n_col = lax.broadcasted_iota(jnp.int32, (N, 1), 0).astype(f32)   # (N, 1)
        m_row = lax.broadcasted_iota(jnp.int32, (1, M), 1).astype(f32)   # (1, M)
        seg = _fdiv(m_row, L)                                            # dir*N + n of column m
        n_of_m = seg - _fdiv(seg, N) * N                                 # batch index n of column m
        sel = jnp.where(n_col == n_of_m, 1.0, 0.0)                       # (N, M) batch selector

        y_flat = jnp.dot(sel, z, preferred_element_type=f32)             # (N, 2*L*C_last)
        wp = lin_ref[:MF, :]                                             # permuted Linear weight
        bl = lin_ref[MF:MF + 1, :]
        out_ref[...] = jnp.dot(y_flat, wp, preferred_element_type=f32) + bl

    return kernel


# ----------------------------------------------------------------------------
# Parameter packing (done once, outside the per-call path)
# ----------------------------------------------------------------------------
def pack_params(params, K):
    """One slab per TemporalBlock: [w1 (K*C_in,C_out); b1; w2 (K*C_out,C_out); b2; wd; bd]."""
    layer_slabs, layer_meta = [], []
    for i, lp in enumerate(params["tcn"]):
        _, c_in, c_out = lp["w1"].shape
        has_down = "wd" in lp
        rows = [lp["w1"].reshape(K * c_in, c_out), lp["b1"],
                lp["w2"].reshape(K * c_out, c_out), lp["b2"]]
        if has_down:
            rows += [lp["wd"], lp["bd"]]
        layer_slabs.append(jnp.concatenate(rows, axis=0))
        layer_meta.append(dict(c_in=c_in, c_out=c_out, has_down=has_down, dil=2 ** i))
    return layer_slabs, layer_meta


def pack_linear(params, L, C_last):
    """Permute the Linear weight so row f = (dir*L + t)*C + c matches the kernel's
    flatten order (PyTorch flat index is dir*C*L + c*L + t), and append the bias row."""
    O = params["b_lin"].shape[0]
    f = np.arange(2 * L * C_last)
    d = f // (L * C_last)
    t = (f // C_last) % L
    c = f % C_last
    perm = d * (C_last * L) + c * L + t
    wp = params["w_lin_t"][perm, :]                     # (2*L*C_last, O)
    return jnp.concatenate([wp, params["b_lin"].reshape(1, O)], axis=0)


# ----------------------------------------------------------------------------
# Full BiTCN forward (single gridless pallas_call; every operand is a full-array
# VMEM block, a few tens of KiB total - well inside scoped VMEM on v5e/v6e/v7x)
# ----------------------------------------------------------------------------
def build_bitcn(layer_meta, K):
    @jax.jit
    def fwd(x, layer_slabs, lin_slab):
        N, L, C0 = x.shape
        C_last = layer_meta[-1]["c_out"]
        O = lin_slab.shape[1]
        # Both time directions stacked on the row axis; the reverse direction is a
        # wrapper-side flip (no arrangement matmul in the kernel).
        x2 = jnp.concatenate([x, jnp.flip(x, axis=1)], axis=0).reshape(2 * N * L, C0)
        kernel = _make_fused_kernel(N, L, K, layer_meta, C_last)
        return pl.pallas_call(
            kernel,
            out_shape=jax.ShapeDtypeStruct((N, O), jnp.float32),
        )(x2, *layer_slabs, lin_slab)

    return fwd


# ----------------------------------------------------------------------------
# Deterministic parameter initialization (mirrors the module's shapes)
# ----------------------------------------------------------------------------
def init_params(key, input_size, output_size, num_channels, K, seq_len):
    params = {"tcn": []}
    for i, c_out in enumerate(num_channels):
        c_in = input_size if i == 0 else num_channels[i - 1]
        key, k1, k2, k3, k4, k5, k6 = jax.random.split(key, 7)
        lp = {
            "w1": 0.01 * jax.random.normal(k1, (K, c_in, c_out), jnp.float32),
            "b1": 0.01 * jax.random.normal(k2, (1, c_out), jnp.float32),
            "w2": 0.01 * jax.random.normal(k3, (K, c_out, c_out), jnp.float32),
            "b2": 0.01 * jax.random.normal(k4, (1, c_out), jnp.float32),
        }
        if c_in != c_out:   # 1x1 downsample conv on the residual path
            lp["wd"] = 0.01 * jax.random.normal(k5, (c_in, c_out), jnp.float32)
            lp["bd"] = 0.01 * jax.random.normal(k6, (1, c_out), jnp.float32)
        params["tcn"].append(lp)

    F = num_channels[-1] * 2 * seq_len
    key, k7, k8 = jax.random.split(key, 3)
    bound = 1.0 / np.sqrt(F)
    params["w_lin_t"] = jax.random.uniform(k7, (F, output_size), jnp.float32, -bound, bound)
    params["b_lin"] = jax.random.uniform(k8, (output_size,), jnp.float32, -bound, bound)
    return params


# ----------------------------------------------------------------------------
# Pure-JAX reference (guards shift / flip / flatten semantics)
# ----------------------------------------------------------------------------
def bitcn_reference(x, params, K):
    N, L, _ = x.shape
    HP = jax.lax.Precision.HIGHEST

    def causal_conv(h, w, b, dil):          # h: (N, L, C_in), w: (K, C_in, C_out)
        Kk, _, c_out = w.shape
        pad = (Kk - 1) * dil
        hp = jnp.pad(h, ((0, 0), (pad, 0), (0, 0)))
        out = jnp.zeros((h.shape[0], h.shape[1], c_out), jnp.float32)
        for k in range(Kk):
            out = out + jnp.einsum("nlc,co->nlo", hp[:, k * dil:k * dil + L, :], w[k], precision=HP)
        return out + b.reshape(1, 1, c_out)

    def tcn(h):
        for i, lp in enumerate(params["tcn"]):
            dil = 2 ** i
            o1 = jax.nn.relu(causal_conv(h, lp["w1"], lp["b1"], dil))
            o2 = jax.nn.relu(causal_conv(o1, lp["w2"], lp["b2"], dil))
            if "wd" in lp:
                res = jnp.einsum("nlc,co->nlo", h, lp["wd"], precision=HP) + lp["bd"].reshape(1, 1, -1)
            else:
                res = h
            h = jax.nn.relu(o2 + res)
        return h                             # (N, L, C_last)

    y1 = tcn(x)
    y2 = tcn(jnp.flip(x, axis=1))
    y = jnp.concatenate([jnp.transpose(y1, (0, 2, 1)),
                         jnp.transpose(y2, (0, 2, 1))], axis=1)          # (N, 2*C_last, L)
    y_flat = y.reshape(N, -1)
    return jnp.dot(y_flat, params["w_lin_t"], precision=HP) + params["b_lin"]


if __name__ == "__main__":
    # Small, module-consistent shapes
    N, seq_len, input_size = 2, 16, 4
    num_channels = [8, 8]
    kernel_size = 2
    output_size = 5

    key = jax.random.PRNGKey(0)
    key, kx, kp = jax.random.split(key, 3)
    x = jax.random.normal(kx, (N, seq_len, input_size), jnp.float32)
    params = init_params(kp, input_size, output_size, num_channels, kernel_size, seq_len)

    layer_slabs, layer_meta = pack_params(params, kernel_size)
    lin_slab = pack_linear(params, seq_len, num_channels[-1])

    fwd = build_bitcn(layer_meta, kernel_size)
    out = fwd(x, layer_slabs, lin_slab)
    jax.block_until_ready(out)
    assert out.shape == (N, output_size) and out.dtype == jnp.float32

    # Correctness guard against a plain-JAX reference of the PyTorch module.
    ref = bitcn_reference(x, params, kernel_size)
    np.testing.assert_allclose(np.asarray(out), np.asarray(ref), rtol=2e-3, atol=2e-4)

    print("KERNEL_OK")
</pallas_src>

<mosaic_0001>
module attributes {stable_mosaic.version = 11 : i64} {
  func.func @kernel(%arg0: memref<64x4xf32, #tpu.memory_space<vmem>>, %arg1: memref<31x8xf32, #tpu.memory_space<vmem>>, %arg2: memref<34x8xf32, #tpu.memory_space<vmem>>, %arg3: memref<257x5xf32, #tpu.memory_space<vmem>>, %arg4: memref<2x5xf32, #tpu.memory_space<vmem>>) attributes {dimension_semantics = [], scalar_prefetch = 0 : i64, scratch_operands = 0 : i64, tpu.core_type = #tpu.core_type<tc>} {
    %0 = tpu.iota {dimensions = array<i32: 0>} : vector<64x1xi32>
    %1 = arith.sitofp %0 : vector<64x1xi32> to vector<64x1xf32>
    %cst = arith.constant 5.000000e-01 : f32
    %2 = vector.broadcast %cst : f32 to vector<64x1xf32>
    %3 = arith.addf %1, %2 : vector<64x1xf32>
    %cst_0 = arith.constant 6.250000e-02 : f32
    %4 = vector.broadcast %cst_0 : f32 to vector<64x1xf32>
    %5 = arith.mulf %3, %4 : vector<64x1xf32>
    %6 = math.floor %5 : vector<64x1xf32>
    %cst_1 = arith.constant 1.600000e+01 : f32
    %7 = vector.broadcast %cst_1 : f32 to vector<64x1xf32>
    %8 = arith.mulf %6, %7 : vector<64x1xf32>
    %9 = arith.subf %1, %8 : vector<64x1xf32>
    %cst_2 = arith.constant 5.000000e-01 : f32
    %10 = vector.broadcast %cst_2 : f32 to vector<64x1xf32>
    %11 = arith.addf %1, %10 : vector<64x1xf32>
    %cst_3 = arith.constant 3.125000e-02 : f32
    %12 = vector.broadcast %cst_3 : f32 to vector<64x1xf32>
    %13 = arith.mulf %11, %12 : vector<64x1xf32>
    %14 = math.floor %13 : vector<64x1xf32>
    %c0 = arith.constant 0 : index
    %c0_4 = arith.constant 0 : index
    %15 = vector.load %arg0[%c0, %c0_4] : memref<64x4xf32, #tpu.memory_space<vmem>>, vector<64x4xf32>
    %c0_5 = arith.constant 0 : index
    %c0_6 = arith.constant 0 : index
    %16 = vector.load %arg1[%c0_5, %c0_6] : memref<31x8xf32, #tpu.memory_space<vmem>>, vector<8x8xf32>
    %c8 = arith.constant 8 : index
    %c0_7 = arith.constant 0 : index
    %17 = vector.load %arg1[%c8, %c0_7] : memref<31x8xf32, #tpu.memory_space<vmem>>, vector<1x8xf32>
    %c9 = arith.constant 9 : index
    %c0_8 = arith.constant 0 : index
    %18 = vector.load %arg1[%c9, %c0_8] : memref<31x8xf32, #tpu.memory_space<vmem>>, vector<16x8xf32>
    %c25 = arith.constant 25 : index
    %c0_9 = arith.constant 0 : index
    %19 = vector.load %arg1[%c25, %c0_9] : memref<31x8xf32, #tpu.memory_space<vmem>>, vector<1x8xf32>
    %cst_10 = arith.constant 0.000000e+00 : f32
    %20 = vector.broadcast %cst_10 : f32 to vector<1x4xf32>
    %21 = vector.extract_strided_slice %15 {offsets = [0, 0], sizes = [63, 4], strides = [1, 1]} : vector<64x4xf32> to vector<63x4xf32>
    %22 = tpu.concatenate %20, %21 in 0 : vector<1x4xf32>, vector<63x4xf32> -> vector<64x4xf32>
    %cst_11 = arith.constant 1.000000e+00 : f32
    %23 = vector.broadcast %cst_11 : f32 to vector<64x1xf32>
    %24 = arith.cmpf oge, %9, %23 : vector<64x1xf32>
    %cst_12 = arith.constant 0.000000e+00 : f32
    %25 = vector.shape_cast %24 : vector<64x1xi1> to vector<64x1xi1>
    %26 = vector.broadcast %25 : vector<64x1xi1> to vector<64x4xi1>
    %27 = vector.broadcast %cst_12 : f32 to vector<64x4xf32>
    %28 = arith.select %26, %22, %27 : vector<64x4xi1>, vector<64x4xf32>
    %29 = tpu.concatenate %28, %15 in 1 : vector<64x4xf32>, vector<64x4xf32> -> vector<64x8xf32>
    %cst_13 = arith.constant dense<0.000000e+00> : vector<64x8xf32>
    %30 = tpu.matmul %29, %16, %cst_13 {dimension_numbers = #tpu.dot_dimension_numbers<[1], [0], [0], [1], [0, 0, 1, 1], [], []>} : vector<64x8xf32>, vector<8x8xf32>, vector<64x8xf32> -> vector<64x8xf32>
    %31 = vector.broadcast %17 : vector<1x8xf32> to vector<64x8xf32>
    %32 = arith.addf %30, %31 : vector<64x8xf32>
    %cst_14 = arith.constant 0.000000e+00 : f32
    %33 = vector.broadcast %cst_14 : f32 to vector<64x8xf32>
    %34 = arith.maximumf %32, %33 : vector<64x8xf32>
    %cst_15 = arith.constant 0.000000e+00 : f32
    %35 = vector.broadcast %cst_15 : f32 to vector<1x8xf32>
    %36 = vector.extract_strided_slice %34 {offsets = [0, 0], sizes = [63, 8], strides = [1, 1]} : vector<64x8xf32> to vector<63x8xf32>
    %37 = tpu.concatenate %35, %36 in 0 : vector<1x8xf32>, vector<63x8xf32> -> vector<64x8xf32>
    %cst_16 = arith.constant 1.000000e+00 : f32
    %38 = vector.broadcast %cst_16 : f32 to vector<64x1xf32>
    %39 = arith.cmpf oge, %9, %38 : vector<64x1xf32>
    %cst_17 = arith.constant 0.000000e+00 : f32
    %40 = vector.shape_cast %39 : vector<64x1xi1> to vector<64x1xi1>
    %41 = vector.broadcast %40 : vector<64x1xi1> to vector<64x8xi1>
    %42 = vector.broadcast %cst_17 : f32 to vector<64x8xf32>
    %43 = arith.select %41, %37, %42 : vector<64x8xi1>, vector<64x8xf32>
    %44 = tpu.concatenate %43, %34 in 1 : vector<64x8xf32>, vector<64x8xf32> -> vector<64x16xf32>
    %cst_18 = arith.constant dense<0.000000e+00> : vector<64x8xf32>
    %45 = tpu.matmul %44, %18, %cst_18 {dimension_numbers = #tpu.dot_dimension_numbers<[1], [0], [0], [1], [0, 0, 1, 1], [], []>} : vector<64x16xf32>, vector<16x8xf32>, vector<64x8xf32> -> vector<64x8xf32>
    %46 = vector.broadcast %19 : vector<1x8xf32> to vector<64x8xf32>
    %47 = arith.addf %45, %46 : vector<64x8xf32>
    %cst_19 = arith.constant 0.000000e+00 : f32
    %48 = vector.broadcast %cst_19 : f32 to vector<64x8xf32>
    %49 = arith.maximumf %47, %48 : vector<64x8xf32>
    %c26 = arith.constant 26 : index
    %c0_20 = arith.constant 0 : index
    %50 = vector.load %arg1[%c26, %c0_20] : memref<31x8xf32, #tpu.memory_space<vmem>>, vector<4x8xf32>
    %c30 = arith.constant 30 : index
    %c0_21 = arith.constant 0 : index
    %51 = vector.load %arg1[%c30, %c0_21] : memref<31x8xf32, #tpu.memory_space<vmem>>, vector<1x8xf32>
    %cst_22 = arith.constant dense<0.000000e+00> : vector<64x8xf32>
    %52 = tpu.matmul %15, %50, %cst_22 {dimension_numbers = #tpu.dot_dimension_numbers<[1], [0], [0], [1], [0, 0, 1, 1], [], []>} : vector<64x4xf32>, vector<4x8xf32>, vector<64x8xf32> -> vector<64x8xf32>
    %53 = vector.broadcast %51 : vector<1x8xf32> to vector<64x8xf32>
    %54 = arith.addf %52, %53 : vector<64x8xf32>
    %55 = arith.addf %49, %54 : vector<64x8xf32>
    %cst_23 = arith.constant 0.000000e+00 : f32
    %56 = vector.broadcast %cst_23 : f32 to vector<64x8xf32>
    %57 = arith.maximumf %55, %56 : vector<64x8xf32>
    %c0_24 = arith.constant 0 : index
    %c0_25 = arith.constant 0 : index
    %58 = vector.load %arg2[%c0_24, %c0_25] : memref<34x8xf32, #tpu.memory_space<vmem>>, vector<16x8xf32>
    %c16 = arith.constant 16 : index
    %c0_26 = arith.constant 0 : index
    %59 = vector.load %arg2[%c16, %c0_26] : memref<34x8xf32, #tpu.memory_space<vmem>>, vector<1x8xf32>
    %c17 = arith.constant 17 : index
    %c0_27 = arith.constant 0 : index
    %60 = vector.load %arg2[%c17, %c0_27] : memref<34x8xf32, #tpu.memory_space<vmem>>, vector<16x8xf32>
    %c33 = arith.constant 33 : index
    %c0_28 = arith.constant 0 : index
    %61 = vector.load %arg2[%c33, %c0_28] : memref<34x8xf32, #tpu.memory_space<vmem>>, vector<1x8xf32>
    %cst_29 = arith.constant 0.000000e+00 : f32
    %62 = vector.broadcast %cst_29 : f32 to vector<2x8xf32>
    %63 = vector.extract_strided_slice %57 {offsets = [0, 0], sizes = [62, 8], strides = [1, 1]} : vector<64x8xf32> to vector<62x8xf32>
    %64 = tpu.concatenate %62, %63 in 0 : vector<2x8xf32>, vector<62x8xf32> -> vector<64x8xf32>
    %cst_30 = arith.constant 2.000000e+00 : f32
    %65 = vector.broadcast %cst_30 : f32 to vector<64x1xf32>
    %66 = arith.cmpf oge, %9, %65 : vector<64x1xf32>
    %cst_31 = arith.constant 0.000000e+00 : f32
    %67 = vector.shape_cast %66 : vector<64x1xi1> to vector<64x1xi1>
    %68 = vector.broadcast %67 : vector<64x1xi1> to vector<64x8xi1>
    %69 = vector.broadcast %cst_31 : f32 to vector<64x8xf32>
    %70 = arith.select %68, %64, %69 : vector<64x8xi1>, vector<64x8xf32>
    %71 = tpu.concatenate %70, %57 in 1 : vector<64x8xf32>, vector<64x8xf32> -> vector<64x16xf32>
    %cst_32 = arith.constant dense<0.000000e+00> : vector<64x8xf32>
    %72 = tpu.matmul %71, %58, %cst_32 {dimension_numbers = #tpu.dot_dimension_numbers<[1], [0], [0], [1], [0, 0, 1, 1], [], []>} : vector<64x16xf32>, vector<16x8xf32>, vector<64x8xf32> -> vector<64x8xf32>
    %73 = vector.broadcast %59 : vector<1x8xf32> to vector<64x8xf32>
    %74 = arith.addf %72, %73 : vector<64x8xf32>
    %cst_33 = arith.constant 0.000000e+00 : f32
    %75 = vector.broadcast %cst_33 : f32 to vector<64x8xf32>
    %76 = arith.maximumf %74, %75 : vector<64x8xf32>
    %cst_34 = arith.constant 0.000000e+00 : f32
    %77 = vector.broadcast %cst_34 : f32 to vector<2x8xf32>
    %78 = vector.extract_strided_slice %76 {offsets = [0, 0], sizes = [62, 8], strides = [1, 1]} : vector<64x8xf32> to vector<62x8xf32>
    %79 = tpu.concatenate %77, %78 in 0 : vector<2x8xf32>, vector<62x8xf32> -> vector<64x8xf32>
    %cst_35 = arith.constant 2.000000e+00 : f32
    %80 = vector.broadcast %cst_35 : f32 to vector<64x1xf32>
    %81 = arith.cmpf oge, %9, %80 : vector<64x1xf32>
    %cst_36 = arith.constant 0.000000e+00 : f32
    %82 = vector.shape_cast %81 : vector<64x1xi1> to vector<64x1xi1>
    %83 = vector.broadcast %82 : vector<64x1xi1> to vector<64x8xi1>
    %84 = vector.broadcast %cst_36 : f32 to vector<64x8xf32>
    %85 = arith.select %83, %79, %84 : vector<64x8xi1>, vector<64x8xf32>
    %86 = tpu.concatenate %85, %76 in 1 : vector<64x8xf32>, vector<64x8xf32> -> vector<64x16xf32>
    %cst_37 = arith.constant dense<0.000000e+00> : vector<64x8xf32>
    %87 = tpu.matmul %86, %60, %cst_37 {dimension_numbers = #tpu.dot_dimension_numbers<[1], [0], [0], [1], [0, 0, 1, 1], [], []>} : vector<64x16xf32>, vector<16x8xf32>, vector<64x8xf32> -> vector<64x8xf32>
    %88 = vector.broadcast %61 : vector<1x8xf32> to vector<64x8xf32>
    %89 = arith.addf %87, %88 : vector<64x8xf32>
    %cst_38 = arith.constant 0.000000e+00 : f32
    %90 = vector.broadcast %cst_38 : f32 to vector<64x8xf32>
    %91 = arith.maximumf %89, %90 : vector<64x8xf32>
    %92 = arith.addf %91, %57 : vector<64x8xf32>
    %cst_39 = arith.constant 0.000000e+00 : f32
    %93 = vector.broadcast %cst_39 : f32 to vector<64x8xf32>
    %94 = arith.maximumf %92, %93 : vector<64x8xf32>
    %95 = tpu.concatenate %94, %94 in 1 : vector<64x8xf32>, vector<64x8xf32> -> vector<64x16xf32>
    %96 = tpu.concatenate %95, %95 in 1 : vector<64x16xf32>, vector<64x16xf32> -> vector<64x32xf32>
    %97 = tpu.concatenate %96, %96 in 1 : vector<64x32xf32>, vector<64x32xf32> -> vector<64x64xf32>
    %98 = tpu.concatenate %97, %97 in 1 : vector<64x64xf32>, vector<64x64xf32> -> vector<64x128xf32>
    %99 = tpu.concatenate %98, %98 in 1 : vector<64x128xf32>, vector<64x128xf32> -> vector<64x256xf32>
    %cst_40 = arith.constant 1.600000e+01 : f32
    %100 = vector.broadcast %cst_40 : f32 to vector<64x1xf32>
    %101 = arith.mulf %14, %100 : vector<64x1xf32>
    %102 = arith.addf %101, %9 : vector<64x1xf32>
    %103 = tpu.iota {dimensions = array<i32: 1>} : vector<1x256xi32>
    %104 = arith.sitofp %103 : vector<1x256xi32> to vector<1x256xf32>
    %cst_41 = arith.constant 5.000000e-01 : f32
    %105 = vector.broadcast %cst_41 : f32 to vector<1x256xf32>
    %106 = arith.addf %104, %105 : vector<1x256xf32>
    %cst_42 = arith.constant 1.250000e-01 : f32
    %107 = vector.broadcast %cst_42 : f32 to vector<1x256xf32>
    %108 = arith.mulf %106, %107 : vector<1x256xf32>
    %109 = math.floor %108 : vector<1x256xf32>
    %110 = vector.broadcast %102 : vector<64x1xf32> to vector<64x256xf32>
    %111 = vector.broadcast %109 : vector<1x256xf32> to vector<64x256xf32>
    %112 = arith.cmpf oeq, %110, %111 : vector<64x256xf32>
    %cst_43 = arith.constant 0.000000e+00 : f32
    %113 = vector.broadcast %cst_43 : f32 to vector<64x256xf32>
    %114 = arith.select %112, %99, %113 : vector<64x256xi1>, vector<64x256xf32>
    %115 = tpu.iota {dimensions = array<i32: 0>} : vector<2x1xi32>
    %116 = arith.sitofp %115 : vector<2x1xi32> to vector<2x1xf32>
    %117 = tpu.iota {dimensions = array<i32: 1>} : vector<1x64xi32>
    %118 = arith.sitofp %117 : vector<1x64xi32> to vector<1x64xf32>
    %cst_44 = arith.constant 5.000000e-01 : f32
    %119 = vector.broadcast %cst_44 : f32 to vector<1x64xf32>
    %120 = arith.addf %118, %119 : vector<1x64xf32>
    %cst_45 = arith.constant 6.250000e-02 : f32
    %121 = vector.broadcast %cst_45 : f32 to vector<1x64xf32>
    %122 = arith.mulf %120, %121 : vector<1x64xf32>
    %123 = math.floor %122 : vector<1x64xf32>
    %cst_46 = arith.constant 5.000000e-01 : f32
    %124 = vector.broadcast %cst_46 : f32 to vector<1x64xf32>
    %125 = arith.addf %123, %124 : vector<1x64xf32>
    %cst_47 = arith.constant 5.000000e-01 : f32
    %126 = vector.broadcast %cst_47 : f32 to vector<1x64xf32>
    %127 = arith.mulf %125, %126 : vector<1x64xf32>
    %128 = math.floor %127 : vector<1x64xf32>
    %cst_48 = arith.constant 2.000000e+00 : f32
    %129 = vector.broadcast %cst_48 : f32 to vector<1x64xf32>
    %130 = arith.mulf %128, %129 : vector<1x64xf32>
    %131 = arith.subf %123, %130 : vector<1x64xf32>
    %132 = vector.broadcast %116 : vector<2x1xf32> to vector<2x64xf32>
    %133 = vector.broadcast %131 : vector<1x64xf32> to vector<2x64xf32>
    %134 = arith.cmpf oeq, %132, %133 : vector<2x64xf32>
    %cst_49 = arith.constant 1.000000e+00 : f32
    %cst_50 = arith.constant 0.000000e+00 : f32
    %135 = vector.broadcast %cst_49 : f32 to vector<2x64xf32>
    %136 = vector.broadcast %cst_50 : f32 to vector<2x64xf32>
    %137 = arith.select %134, %135, %136 : vector<2x64xi1>, vector<2x64xf32>
    %cst_51 = arith.constant dense<0.000000e+00> : vector<2x256xf32>
    %138 = tpu.matmul %137, %114, %cst_51 {dimension_numbers = #tpu.dot_dimension_numbers<[1], [0], [0], [1], [0, 0, 1, 1], [], []>} : vector<2x64xf32>, vector<64x256xf32>, vector<2x256xf32> -> vector<2x256xf32>
    %c0_52 = arith.constant 0 : index
    %c0_53 = arith.constant 0 : index
    %139 = vector.load %arg3[%c0_52, %c0_53] : memref<257x5xf32, #tpu.memory_space<vmem>>, vector<256x5xf32>
    %c256 = arith.constant 256 : index
    %c0_54 = arith.constant 0 : index
    %140 = vector.load %arg3[%c256, %c0_54] : memref<257x5xf32, #tpu.memory_space<vmem>>, vector<1x5xf32>
    %cst_55 = arith.constant dense<0.000000e+00> : vector<2x5xf32>
    %141 = tpu.matmul %138, %139, %cst_55 {dimension_numbers = #tpu.dot_dimension_numbers<[1], [0], [0], [1], [0, 0, 1, 1], [], []>} : vector<2x256xf32>, vector<256x5xf32>, vector<2x5xf32> -> vector<2x5xf32>
    %142 = vector.broadcast %140 : vector<1x5xf32> to vector<2x5xf32>
    %143 = arith.addf %141, %142 : vector<2x5xf32>
    %c0_56 = arith.constant 0 : index
    %c0_57 = arith.constant 0 : index
    %144 = vector.load %arg4[%c0_56, %c0_57] : memref<2x5xf32, #tpu.memory_space<vmem>>, vector<2x5xf32>
    tpu.vector_store %arg4[%c0_56, %c0_57], %143 {strides = array<i32>} : memref<2x5xf32, #tpu.memory_space<vmem>>, vector<2x5xf32>,
    return
  }
}

</mosaic_0001>

<llo_original>
// kernel: fwd.1
$region0: #{fwd.1}
  #allocation0 [shape = 'u32[]', space=smem, size = 0x4, offset = 0x4, fixed_abs, tag = 'smem constant byte address 0x4 - core index']
  #allocation1 [shape = 'u32[144,128]{1,0:T(1,128)}', space=vmem, size = 0x12000, scoped, tag = 'internal scratch']
  %s0 = inlined_call_operand.vmem [shape: f32[64,4], index: 0, kind: input, shape index: {}]
  %s1 = inlined_call_operand.vmem [shape: f32[31,8], index: 1, kind: input, shape index: {}]
  %s2 = inlined_call_operand.vmem [shape: f32[34,8], index: 2, kind: input, shape index: {}]
  %s3 = inlined_call_operand.vmem [shape: f32[257,5], index: 3, kind: input, shape index: {}]
  %s4 = inlined_call_operand.hbm [shape: f32[2,5], index: 4, kind: output, shape index: {}]
  %s5 = sld [smem:[#allocation0]]
  $region26: #{fwd.1} parent=0
    _
  %s7 = ssub.s32 1, %s5
  %s8 = scalar_select 0, %s7, %s5
  $region1: #{fwd.1} parent=0
    #allocation2 [shape = 'u8[1024]{0}', space=vmem, size = 0x400, scoped, tag = 'output window, operand 0, single buffered']
    #allocation3 [shape = 's32[1]{0}', space=sflag, size = 0x4, scoped, tag = 'scoped memory for fwd.1']
    %9 = vsyncpa [#allocation3], 0
    // Predicated region
    $region2: #{fwd.1} parent=1 // pred_check
      _
    $region3: #{fwd.1} parent=1 // pred_check_branch
      %11 = sbr.rel (0) target = $region5
    $region4: #{fwd.1} parent=1 // pred_region
      _
    $region5: #{fwd.1} parent=1 // pred_fallthru
      _
    // Predicated region
    $region6: #{fwd.1} parent=1 // pred_check
      _
    $region7: #{fwd.1} parent=1 // pred_check_branch
      %13 = sbr.rel (0) target = $region9
    $region8: #{fwd.1} parent=1 // pred_region
      _
    $region9: #{fwd.1} parent=1 // pred_fallthru
      _
    // Predicated region
    $region10: #{fwd.1} parent=1 // pred_check
      _
    $region11: #{fwd.1} parent=1 // pred_check_branch
      %15 = sbr.rel (0) target = $region13
    $region12: #{fwd.1} parent=1 // pred_region
      _
    $region13: #{fwd.1} parent=1 // pred_fallthru
      _
    // Predicated region
    $region14: #{fwd.1} parent=1 // pred_check
      _
    $region15: #{fwd.1} parent=1 // pred_check_branch
      %17 = sbr.rel (0) target = $region17
    $region16: #{fwd.1} parent=1 // pred_region
      _
    $region17: #{fwd.1} parent=1 // pred_fallthru
      _
    %v18 = vlaneseq
    %v19 = vshrl.u32 %v18, 7
    %v20 = vadd.s32 %v19, 8
    %v21 = vadd.s32 %v19, 16
    %v22 = vadd.s32 %v19, 24
    %v23 = vadd.s32 %v19, 32
    %v24 = vadd.s32 %v19, 40
    %v25 = vadd.s32 %v19, 48
    %v26 = vadd.s32 %v19, 56
    %v27 = vcvt.s32.f32 %v19
    %v28 = vcvt.s32.f32 %v20
    %v29 = vcvt.s32.f32 %v21
    %v30 = vcvt.s32.f32 %v22
    %v31 = vcvt.s32.f32 %v23
    %v32 = vcvt.s32.f32 %v24
    %v33 = vcvt.s32.f32 %v25
    %v34 = vcvt.s32.f32 %v26
    %v35 = vadd.f32 %v27, 0.5
    %v36 = vadd.f32 %v28, 0.5
    %v37 = vadd.f32 %v29, 0.5
    %v38 = vadd.f32 %v30, 0.5
    %v39 = vadd.f32 %v31, 0.5
    %v40 = vadd.f32 %v32, 0.5
    %v41 = vadd.f32 %v33, 0.5
    %v42 = vadd.f32 %v34, 0.5
    %v43 = vmul.f32 %v35, 0.0625
    %v44 = vmul.f32 %v36, 0.0625
    %v45 = vmul.f32 %v37, 0.0625
    %v46 = vmul.f32 %v38, 0.0625
    %v47 = vmul.f32 %v39, 0.0625
    %v48 = vmul.f32 %v40, 0.0625
    %v49 = vmul.f32 %v41, 0.0625
    %v50 = vmul.f32 %v42, 0.0625
    %v51 = vfloor.f32 %v43
    %v52 = vfloor.f32 %v44
    %v53 = vfloor.f32 %v45
    %v54 = vfloor.f32 %v46
    %v55 = vfloor.f32 %v47
    %v56 = vfloor.f32 %v48
    %v57 = vfloor.f32 %v49
    %v58 = vfloor.f32 %v50
    %v59 = vmul.f32 %v51, 16.0
    %v60 = vmul.f32 %v52, 16.0
    %v61 = vmul.f32 %v53, 16.0
    %v62 = vmul.f32 %v54, 16.0
    %v63 = vmul.f32 %v55, 16.0
    %v64 = vmul.f32 %v56, 16.0
    %v65 = vmul.f32 %v57, 16.0
    %v66 = vmul.f32 %v58, 16.0
    %v67 = vsub.f32 %v27, %v59
    %v68 = vsub.f32 %v28, %v60
    %v69 = vsub.f32 %v29, %v61
    %v70 = vsub.f32 %v30, %v62
    %v71 = vsub.f32 %v31, %v63
    %v72 = vsub.f32 %v32, %v64
    %v73 = vsub.f32 %v33, %v65
    %v74 = vsub.f32 %v34, %v66
    %v75 = vmul.f32 %v35, 0.03125
    %v76 = vmul.f32 %v36, 0.03125
    %v77 = vmul.f32 %v37, 0.03125
    %v78 = vmul.f32 %v38, 0.03125
    %v79 = vmul.f32 %v39, 0.03125
    %v80 = vmul.f32 %v40, 0.03125
    %v81 = vmul.f32 %v41, 0.03125
    %v82 = vmul.f32 %v42, 0.03125
    %v83 = vfloor.f32 %v75
    %v84 = vfloor.f32 %v76
    %v85 = vfloor.f32 %v77
    %v86 = vfloor.f32 %v78
    %v87 = vfloor.f32 %v79
    %v88 = vfloor.f32 %v80
    %v89 = vfloor.f32 %v81
    %v90 = vfloor.f32 %v82
    %v91 = vld [vmem:[%s0] sm:$0xff]
    %v92 = vld [vmem:[%s0 + $0x8] sm:$0xff]
    %v93 = vld [vmem:[%s0 + $0x10] sm:$0xff]
    %v94 = vld [vmem:[%s0 + $0x18] sm:$0xff]
    %v95 = vld [vmem:[%s0 + $0x20] sm:$0xff]
    %v96 = vld [vmem:[%s0 + $0x28] sm:$0xff]
    %v97 = vld [vmem:[%s0 + $0x30] sm:$0xff]
    %v98 = vld [vmem:[%s0 + $0x38] sm:$0xff]
    %v99 = vld [vmem:[%s1] sm:$0xff]
    %v100 = vld [vmem:[%s1 + $0x8] sm:$0x1]
    %v101 = vld [vmem:[%s1 + $0x9] sm:$0xff]
    %v102 = vld [vmem:[%s1 + $0x11] sm:$0xff]
    %v103 = vld [vmem:[%s1 + $0x19] sm:$0x1]
    %vm112 = vcmask 1040384
    %v113 = vrot.slane %v91, 7
    %v114 = vrot.slane %v92, 7
    %v115 = vsel %vm112, %v113, %v114
    %v116 = vrot.slane %v93, 7
    %v117 = vsel %vm112, %v114, %v116
    %v118 = vrot.slane %v94, 7
    %v119 = vsel %vm112, %v116, %v118
    %v120 = vrot.slane %v95, 7
    %v121 = vsel %vm112, %v118, %v120
    %v122 = vrot.slane %v96, 7
    %v123 = vsel %vm112, %v120, %v122
    %v124 = vrot.slane %v97, 7
    %v125 = vsel %vm112, %v122, %v124
    %v126 = vrot.slane %v98, 7
    %v127 = vsel %vm112, %v124, %v126
    %v136 = vsel %vm112, 0.0, %v113
    %vm137 = vcmp.ge.f32.partialorder %v67, 1.0
    %vm138 = vcmp.ge.f32.partialorder %v68, 1.0
    %vm139 = vcmp.ge.f32.partialorder %v69, 1.0
    %vm140 = vcmp.ge.f32.partialorder %v70, 1.0
    %vm141 = vcmp.ge.f32.partialorder %v71, 1.0
    %vm142 = vcmp.ge.f32.partialorder %v72, 1.0
    %vm143 = vcmp.ge.f32.partialorder %v73, 1.0
    %vm144 = vcmp.ge.f32.partialorder %v74, 1.0
    %v145 = vsel %vm137, 1, 0
    %v146 = vsel %vm138, 1, 0
    %v147 = vsel %vm139, 1, 0
    %v148 = vsel %vm140, 1, 0
    %v149 = vsel %vm141, 1, 0
    %v150 = vsel %vm142, 1, 0
    %v151 = vsel %vm143, 1, 0
    %v152 = vsel %vm144, 1, 0
    %vm153 = vcmp.eq.s32.totalorder %v145, 1
    %vm154 = vcmp.eq.s32.totalorder %v146, 1
    %vm155 = vcmp.eq.s32.totalorder %v147, 1
    %vm156 = vcmp.eq.s32.totalorder %v148, 1
    %vm157 = vcmp.eq.s32.totalorder %v149, 1
    %vm158 = vcmp.eq.s32.totalorder %v150, 1
    %vm159 = vcmp.eq.s32.totalorder %v151, 1
    %vm160 = vcmp.eq.s32.totalorder %v152, 1
    %v161 = vsel %vm153, %v136, 0.0
    %v162 = vsel %vm154, %v115, 0.0
    %v163 = vsel %vm155, %v117, 0.0
    %v164 = vsel %vm156, %v119, 0.0
    %v165 = vsel %vm157, %v121, 0.0
    %v166 = vsel %vm158, %v123, 0.0
    %v167 = vsel %vm159, %v125, 0.0
    %v168 = vsel %vm160, %v127, 0.0
    %169 = vrot.lane.b32.xlu0 %v91, 4
    %v170 = vpop.permute.xlu0 %169
    %171 = vrot.lane.b32.xlu0 %v92, 4
    %v172 = vpop.permute.xlu0 %171
    %173 = vrot.lane.b32.xlu0 %v93, 4
    %v174 = vpop.permute.xlu0 %173
    %175 = vrot.lane.b32.xlu0 %v94, 4
    %v176 = vpop.permute.xlu0 %175
    %177 = vrot.lane.b32.xlu0 %v95, 4
    %v178 = vpop.permute.xlu0 %177
    %179 = vrot.lane.b32.xlu0 %v96, 4
    %v180 = vpop.permute.xlu0 %179
    %181 = vrot.lane.b32.xlu0 %v97, 4
    %v182 = vpop.permute.xlu0 %181
    %183 = vrot.lane.b32.xlu0 %v98, 4
    %v184 = vpop.permute.xlu0 %183
    %vm193 = vcmask 31744
    %v194 = vsel %vm193, %v161, %v170
    %v195 = vsel %vm193, %v162, %v172
    %v196 = vsel %vm193, %v163, %v174
    %v197 = vsel %vm193, %v164, %v176
    %v198 = vsel %vm193, %v165, %v178
    %v199 = vsel %vm193, %v166, %v180
    %v200 = vsel %vm193, %v167, %v182
    %v201 = vsel %vm193, %v168, %v184
    %v202 = vlaneseq
    %v203 = vshrl.u32 %v202, 7
    %v204 = vsub.s32 0, %v203
    %v205 = vrot.slane %v100, %v204
    %vm206 = vcmask 64512
    %v208 = vsel %vm206, %v194, 0
    %v211 = vsel %vm206, %v195, 0
    %v214 = vsel %vm206, %v196, 0
    %v217 = vsel %vm206, %v197, 0
    %v220 = vsel %vm206, %v198, 0
    %v223 = vsel %vm206, %v199, 0
    %v226 = vsel %vm206, %v200, 0
    %v229 = vsel %vm206, %v201, 0
    %231 = vmatprep.subr.mxu0 0.0
    %232 = vmatpush1.msra.mxu0 %v99
    %233 = vmatprep.subr.mxu0 0.0
    %234 = vmatpush1.msra.mxu0 0.0
    %235 = vmatprep.subr.mxu0 0.0
    %236 = vmatpush1.msra.mxu0 0.0
    %237 = vmatprep.subr.mxu0 0.0
    %238 = vmatpush1.msra.mxu0 0.0
    %239 = vmatprep.subr.mxu0 0.0
    %240 = vmatpush1.msra.mxu0 0.0
    %241 = vmatprep.subr.mxu0 0.0
    %242 = vmatpush1.msra.mxu0 0.0
    %243 = vmatprep.subr.mxu0 0.0
    %244 = vmatpush1.msra.mxu0 0.0
    %245 = vmatprep.subr.mxu0 0.0
    %246 = vmatpush1.msra.mxu0 0.0
    %247 = vmatprep.subr.mxu0 0.0
    %248 = vmatpush1.msra.mxu0 0.0
    %249 = vmatprep.subr.mxu0 0.0
    %250 = vmatpush1.msra.mxu0 0.0
    %251 = vmatprep.subr.mxu0 0.0
    %252 = vmatpush1.msra.mxu0 0.0
    %253 = vmatprep.subr.mxu0 0.0
    %254 = vmatpush1.msra.mxu0 0.0
    %255 = vmatprep.subr.mxu0 0.0
    %256 = vmatpush1.msra.mxu0 0.0
    %257 = vmatprep.subr.mxu0 0.0
    %258 = vmatpush1.msra.mxu0 0.0
    %259 = vmatprep.subr.mxu0 0.0
    %260 = vmatpush1.msra.mxu0 0.0
    %261 = vmatprep.subr.mxu0 0.0
    %262 = vmatpush1.msra.mxu0 0.0
    %263 = vmatprep.subr.mxu0 0.0
    %264 = vmatpush1.msra.mxu0 0.0
    %265 = vmatprep.subr.mxu0 0.0
    %266 = vmatpush1.msra.mxu0 0.0
    %267 = vmatprep.subr.mxu0 0.0
    %268 = vmatpush1.msra.mxu0 0.0
    %269 = vmatprep.subr.mxu0 0.0
    %270 = vmatpush1.msra.mxu0 0.0
    %271 = vmatprep.subr.mxu0 0.0
    %272 = vmatpush1.msra.mxu0 0.0
    %273 = vmatprep.subr.mxu0 0.0
    %274 = vmatpush1.msra.mxu0 0.0
    %275 = vmatprep.subr.mxu0 0.0
    %276 = vmatpush1.msra.mxu0 0.0
    %277 = vmatprep.subr.mxu0 0.0
    %278 = vmatpush1.msra.mxu0 0.0
    %279 = vmatprep.subr.mxu0 0.0
    %280 = vmatpush1.msra.mxu0 0.0
    %281 = vmatprep.subr.mxu0 0.0
    %282 = vmatpush1.msra.mxu0 0.0
    %283 = vmatprep.subr.mxu0 0.0
    %284 = vmatpush1.msra.mxu0 0.0
    %285 = vmatprep.subr.mxu0 0.0
    %286 = vmatpush1.msra.mxu0 0.0
    %287 = vmatprep.subr.mxu0 0.0
    %288 = vmatpush1.msra.mxu0 0.0
    %289 = vmatprep.subr.mxu0 0.0
    %290 = vmatpush1.msra.mxu0 0.0
    %291 = vmatprep.subr.mxu0 0.0
    %292 = vmatpush1.msra.mxu0 0.0
    %293 = vmatprep.subr.mxu0 0.0
    %294 = vmatpush1.msra.mxu0 0.0
    %295 = vmatprep.mubr.f32.mxu0 0.0
    %296 = vmatmul.mubr.f32.gmra.mrb[0].mxu0 %v208
    %v297 = vpop.f32.mrb[0].mxu0
    %v298 = vadd.f32 %v205, %v297
    %v299 = vpop.f32.mrb[0].mxu0
    %300 = vmatprep.mubr.f32.mxu0 0.0
    %301 = vmatmul.mubr.f32.gmra.mrb[0].mxu0 %v211
    %v302 = vpop.f32.mrb[0].mxu0
    %v303 = vadd.f32 %v205, %v302
    %v304 = vpop.f32.mrb[0].mxu0
    %305 = vmatprep.mubr.f32.mxu0 0.0
    %306 = vmatmul.mubr.f32.gmra.mrb[0].mxu0 %v214
    %v307 = vpop.f32.mrb[0].mxu0
    %v308 = vadd.f32 %v205, %v307
    %v309 = vpop.f32.mrb[0].mxu0
    %310 = vmatprep.mubr.f32.mxu0 0.0
    %311 = vmatmul.mubr.f32.gmra.mrb[0].mxu0 %v217
    %v312 = vpop.f32.mrb[0].mxu0
    %v313 = vadd.f32 %v205, %v312
    %v314 = vpop.f32.mrb[0].mxu0
    %315 = vmatprep.mubr.f32.mxu0 0.0
    %316 = vmatmul.mubr.f32.gmra.mrb[0].mxu0 %v220
    %v317 = vpop.f32.mrb[0].mxu0
    %v318 = vadd.f32 %v205, %v317
    %v319 = vpop.f32.mrb[0].mxu0
    %320 = vmatprep.mubr.f32.mxu0 0.0
    %321 = vmatmul.mubr.f32.gmra.mrb[0].mxu0 %v223
    %v322 = vpop.f32.mrb[0].mxu0
    %v323 = vadd.f32 %v205, %v322
    %v324 = vpop.f32.mrb[0].mxu0
    %325 = vmatprep.mubr.f32.mxu0 0.0
    %326 = vmatmul.mubr.f32.gmra.mrb[0].mxu0 %v226
    %v327 = vpop.f32.mrb[0].mxu0
    %v328 = vadd.f32 %v205, %v327
    %v329 = vpop.f32.mrb[0].mxu0
    %330 = vmatprep.mubr.f32.mxu0 0.0
    %331 = vmatmul.mubr.f32.gmra.mrb[0].mxu0 %v229
    %v332 = vpop.f32.mrb[0].mxu0
    %v333 = vadd.f32 %v205, %v332
    %v334 = vpop.f32.mrb[0].mxu0
    %335 = vdwg.mxu0
    %v336 = vmax.f32 %v298, 0.0
    %v337 = vmax.f32 %v303, 0.0
    %v338 = vmax.f32 %v308, 0.0
    %v339 = vmax.f32 %v313, 0.0
    %v340 = vmax.f32 %v318, 0.0
    %v341 = vmax.f32 %v323, 0.0
    %v342 = vmax.f32 %v328, 0.0
    %v343 = vmax.f32 %v333, 0.0
    %v352 = vrot.slane %v336, 7
    %v353 = vrot.slane %v337, 7
    %v354 = vsel %vm112, %v352, %v353
    %v355 = vrot.slane %v338, 7
    %v356 = vsel %vm112, %v353, %v355
    %v357 = vrot.slane %v339, 7
    %v358 = vsel %vm112, %v355, %v357
    %v359 = vrot.slane %v340, 7
    %v360 = vsel %vm112, %v357, %v359
    %v361 = vrot.slane %v341, 7
    %v362 = vsel %vm112, %v359, %v361
    %v363 = vrot.slane %v342, 7
    %v364 = vsel %vm112, %v361, %v363
    %v365 = vrot.slane %v343, 7
    %v366 = vsel %vm112, %v363, %v365
    %v375 = vsel %vm112, 0.0, %v352
    %v376 = vsel %vm153, %v375, 0.0
    %v377 = vsel %vm154, %v354, 0.0
    %v378 = vsel %vm155, %v356, 0.0
    %v379 = vsel %vm156, %v358, 0.0
    %v380 = vsel %vm157, %v360, 0.0
    %v381 = vsel %vm158, %v362, 0.0
    %v382 = vsel %vm159, %v364, 0.0
    %v383 = vsel %vm160, %v366, 0.0
    %384 = vrot.lane.b32.xlu0 %v336, 8
    %v385 = vpop.permute.xlu0 %384
    %386 = vrot.lane.b32.xlu0 %v337, 8
    %v387 = vpop.permute.xlu0 %386
    %388 = vrot.lane.b32.xlu0 %v338, 8
    %v389 = vpop.permute.xlu0 %388
    %390 = vrot.lane.b32.xlu0 %v339, 8
    %v391 = vpop.permute.xlu0 %390
    %392 = vrot.lane.b32.xlu0 %v340, 8
    %v393 = vpop.permute.xlu0 %392
    %394 = vrot.lane.b32.xlu0 %v341, 8
    %v395 = vpop.permute.xlu0 %394
    %396 = vrot.lane.b32.xlu0 %v342, 8
    %v397 = vpop.permute.xlu0 %396
    %398 = vrot.lane.b32.xlu0 %v343, 8
    %v399 = vpop.permute.xlu0 %398
    %v408 = vsel %vm206, %v376, %v385
    %v409 = vsel %vm206, %v377, %v387
    %v410 = vsel %vm206, %v378, %v389
    %v411 = vsel %vm206, %v379, %v391
    %v412 = vsel %vm206, %v380, %v393
    %v413 = vsel %vm206, %v381, %v395
    %v414 = vsel %vm206, %v382, %v397
    %v415 = vsel %vm206, %v383, %v399
    %v416 = vlaneseq
    %v417 = vshrl.u32 %v416, 7
    %v418 = vsub.s32 0, %v417
    %v419 = vrot.slane %v103, %v418
    %vm420 = vcmask 130048
    %v422 = vsel %vm420, %v408, 0
    %v425 = vsel %vm420, %v409, 0
    %v428 = vsel %vm420, %v410, 0
    %v431 = vsel %vm420, %v411, 0
    %v434 = vsel %vm420, %v412, 0
    %v437 = vsel %vm420, %v413, 0
    %v440 = vsel %vm420, %v414, 0
    %v443 = vsel %vm420, %v415, 0
    %445 = vmatprep.subr.mxu0 0.0
    %446 = vmatpush1.msra.mxu0 %v101
    %447 = vmatprep.subr.mxu0 0.0
    %448 = vmatpush1.msra.mxu0 %v102
    %449 = vmatprep.subr.mxu0 0.0
    %450 = vmatpush1.msra.mxu0 0.0
    %451 = vmatprep.subr.mxu0 0.0
    %452 = vmatpush1.msra.mxu0 0.0
    %453 = vmatprep.subr.mxu0 0.0
    %454 = vmatpush1.msra.mxu0 0.0
    %455 = vmatprep.subr.mxu0 0.0
    %456 = vmatpush1.msra.mxu0 0.0
    %457 = vmatprep.subr.mxu0 0.0
    %458 = vmatpush1.msra.mxu0 0.0
    %459 = vmatprep.subr.mxu0 0.0
    %460 = vmatpush1.msra.mxu0 0.0
    %461 = vmatprep.subr.mxu0 0.0
    %462 = vmatpush1.msra.mxu0 0.0
    %463 = vmatprep.subr.mxu0 0.0
    %464 = vmatpush1.msra.mxu0 0.0
    %465 = vmatprep.subr.mxu0 0.0
    %466 = vmatpush1.msra.mxu0 0.0
    %467 = vmatprep.subr.mxu0 0.0
    %468 = vmatpush1.msra.mxu0 0.0
    %469 = vmatprep.subr.mxu0 0.0
    %470 = vmatpush1.msra.mxu0 0.0
    %471 = vmatprep.subr.mxu0 0.0
    %472 = vmatpush1.msra.mxu0 0.0
    %473 = vmatprep.subr.mxu0 0.0
    %474 = vmatpush1.msra.mxu0 0.0
    %475 = vmatprep.subr.mxu0 0.0
    %476 = vmatpush1.msra.mxu0 0.0
    %477 = vmatprep.subr.mxu0 0.0
    %478 = vmatpush1.msra.mxu0 0.0
    %479 = vmatprep.subr.mxu0 0.0
    %480 = vmatpush1.msra.mxu0 0.0
    %481 = vmatprep.subr.mxu0 0.0
    %482 = vmatpush1.msra.mxu0 0.0
    %483 = vmatprep.subr.mxu0 0.0
    %484 = vmatpush1.msra.mxu0 0.0
    %485 = vmatprep.subr.mxu0 0.0
    %486 = vmatpush1.msra.mxu0 0.0
    %487 = vmatprep.subr.mxu0 0.0
    %488 = vmatpush1.msra.mxu0 0.0
    %489 = vmatprep.subr.mxu0 0.0
    %490 = vmatpush1.msra.mxu0 0.0
    %491 = vmatprep.subr.mxu0 0.0
    %492 = vmatpush1.msra.mxu0 0.0
    %493 = vmatprep.subr.mxu0 0.0
    %494 = vmatpush1.msra.mxu0 0.0
    %495 = vmatprep.subr.mxu0 0.0
    %496 = vmatpush1.msra.mxu0 0.0
    %497 = vmatprep.subr.mxu0 0.0
    %498 = vmatpush1.msra.mxu0 0.0
    %499 = vmatprep.subr.mxu0 0.0
    %500 = vmatpush1.msra.mxu0 0.0
    %501 = vmatprep.subr.mxu0 0.0
    %502 = vmatpush1.msra.mxu0 0.0
    %503 = vmatprep.subr.mxu0 0.0
    %504 = vmatpush1.msra.mxu0 0.0
    %505 = vmatprep.subr.mxu0 0.0
    %506 = vmatpush1.msra.mxu0 0.0
    %507 = vmatprep.subr.mxu0 0.0
    %508 = vmatpush1.msra.mxu0 0.0
    %509 = vmatprep.mubr.f32.mxu0 0.0
    %510 = vmatmul.mubr.f32.gmra.mrb[0].mxu0 %v422
    %v511 = vpop.f32.mrb[0].mxu0
    %v512 = vadd.f32 %v419, %v511
    %v513 = vpop.f32.mrb[0].mxu0
    %514 = vmatprep.mubr.f32.mxu0 0.0
    %515 = vmatmul.mubr.f32.gmra.mrb[0].mxu0 %v425
    %v516 = vpop.f32.mrb[0].mxu0
    %v517 = vadd.f32 %v419, %v516
    %v518 = vpop.f32.mrb[0].mxu0
    %519 = vmatprep.mubr.f32.mxu0 0.0
    %520 = vmatmul.mubr.f32.gmra.mrb[0].mxu0 %v428
    %v521 = vpop.f32.mrb[0].mxu0
    %v522 = vadd.f32 %v419, %v521
    %v523 = vpop.f32.mrb[0].mxu0
    %524 = vmatprep.mubr.f32.mxu0 0.0
    %525 = vmatmul.mubr.f32.gmra.mrb[0].mxu0 %v431
    %v526 = vpop.f32.mrb[0].mxu0
    %v527 = vadd.f32 %v419, %v526
    %v528 = vpop.f32.mrb[0].mxu0
    %529 = vmatprep.mubr.f32.mxu0 0.0
    %530 = vmatmul.mubr.f32.gmra.mrb[0].mxu0 %v434
    %v531 = vpop.f32.mrb[0].mxu0
    %v532 = vadd.f32 %v419, %v531
    %v533 = vpop.f32.mrb[0].mxu0
    %534 = vmatprep.mubr.f32.mxu0 0.0
    %535 = vmatmul.mubr.f32.gmra.mrb[0].mxu0 %v437
    %v536 = vpop.f32.mrb[0].mxu0
    %v537 = vadd.f32 %v419, %v536
    %v538 = vpop.f32.mrb[0].mxu0
    %539 = vmatprep.mubr.f32.mxu0 0.0
    %540 = vmatmul.mubr.f32.gmra.mrb[0].mxu0 %v440
    %v541 = vpop.f32.mrb[0].mxu0
    %v542 = vadd.f32 %v419, %v541
    %v543 = vpop.f32.mrb[0].mxu0
    %544 = vmatprep.mubr.f32.mxu0 0.0
    %545 = vmatmul.mubr.f32.gmra.mrb[0].mxu0 %v443
    %v546 = vpop.f32.mrb[0].mxu0
    %v547 = vadd.f32 %v419, %v546
    %v548 = vpop.f32.mrb[0].mxu0
    %549 = vdwg.mxu0
    %v550 = vmax.f32 %v512, 0.0
    %v551 = vmax.f32 %v517, 0.0
    %v552 = vmax.f32 %v522, 0.0
    %v553 = vmax.f32 %v527, 0.0
    %v554 = vmax.f32 %v532, 0.0
    %v555 = vmax.f32 %v537, 0.0
    %v556 = vmax.f32 %v542, 0.0
    %v557 = vmax.f32 %v547, 0.0
    %v558 = vld [vmem:[%s1 + $0x1a] sm:$0xf]
    %v559 = vld [vmem:[%s1 + $0x1e] sm:$0x1]
    %v560 = vlaneseq
    %v561 = vshrl.u32 %v560, 7
    %v562 = vsub.s32 0, %v561
    %v563 = vrot.slane %v559, %v562
    %v564 = vsel %vm193, %v91, 0
    %v566 = vsel %vm193, %v92, 0
    %v568 = vsel %vm193, %v93, 0
    %v570 = vsel %vm193, %v94, 0
    %v572 = vsel %vm193, %v95, 0
    %v574 = vsel %vm193, %v96, 0
    %v576 = vsel %vm193, %v97, 0
    %v578 = vsel %vm193, %v98, 0
    %vm580 = vcmask 1043456
    %v582 = vsel %vm580, %v558, 0
    %584 = vmatprep.subr.mxu0 0.0
    %585 = vmatpush1.msra.mxu0 %v582
    %586 = vmatprep.subr.mxu0 0.0
    %587 = vmatpush1.msra.mxu0 0.0
    %588 = vmatprep.subr.mxu0 0.0
    %589 = vmatpush1.msra.mxu0 0.0
    %590 = vmatprep.subr.mxu0 0.0
    %591 = vmatpush1.msra.mxu0 0.0
    %592 = vmatprep.subr.mxu0 0.0
    %593 = vmatpush1.msra.mxu0 0.0
    %594 = vmatprep.subr.mxu0 0.0
    %595 = vmatpush1.msra.mxu0 0.0
    %596 = vmatprep.subr.mxu0 0.0
    %597 = vmatpush1.msra.mxu0 0.0
    %598 = vmatprep.subr.mxu0 0.0
    %599 = vmatpush1.msra.mxu0 0.0
    %600 = vmatprep.subr.mxu0 0.0
    %601 = vmatpush1.msra.mxu0 0.0
    %602 = vmatprep.subr.mxu0 0.0
    %603 = vmatpush1.msra.mxu0 0.0
    %604 = vmatprep.subr.mxu0 0.0
    %605 = vmatpush1.msra.mxu0 0.0
    %606 = vmatprep.subr.mxu0 0.0
    %607 = vmatpush1.msra.mxu0 0.0
    %608 = vmatprep.subr.mxu0 0.0
    %609 = vmatpush1.msra.mxu0 0.0
    %610 = vmatprep.subr.mxu0 0.0
    %611 = vmatpush1.msra.mxu0 0.0
    %612 = vmatprep.subr.mxu0 0.0
    %613 = vmatpush1.msra.mxu0 0.0
    %614 = vmatprep.subr.mxu0 0.0
    %615 = vmatpush1.msra.mxu0 0.0
    %616 = vmatprep.subr.mxu0 0.0
    %617 = vmatpush1.msra.mxu0 0.0
    %618 = vmatprep.subr.mxu0 0.0
    %619 = vmatpush1.msra.mxu0 0.0
    %620 = vmatprep.subr.mxu0 0.0
    %621 = vmatpush1.msra.mxu0 0.0
    %622 = vmatprep.subr.mxu0 0.0
    %623 = vmatpush1.msra.mxu0 0.0
    %624 = vmatprep.subr.mxu0 0.0
    %625 = vmatpush1.msra.mxu0 0.0
    %626 = vmatprep.subr.mxu0 0.0
    %627 = vmatpush1.msra.mxu0 0.0
    %628 = vmatprep.subr.mxu0 0.0
    %629 = vmatpush1.msra.mxu0 0.0
    %630 = vmatprep.subr.mxu0 0.0
    %631 = vmatpush1.msra.mxu0 0.0
    %632 = vmatprep.subr.mxu0 0.0
    %633 = vmatpush1.msra.mxu0 0.0
    %634 = vmatprep.subr.mxu0 0.0
    %635 = vmatpush1.msra.mxu0 0.0
    %636 = vmatprep.subr.mxu0 0.0
    %637 = vmatpush1.msra.mxu0 0.0
    %638 = vmatprep.subr.mxu0 0.0
    %639 = vmatpush1.msra.mxu0 0.0
    %640 = vmatprep.subr.mxu0 0.0
    %641 = vmatpush1.msra.mxu0 0.0
    %642 = vmatprep.subr.mxu0 0.0
    %643 = vmatpush1.msra.mxu0 0.0
    %644 = vmatprep.subr.mxu0 0.0
    %645 = vmatpush1.msra.mxu0 0.0
    %646 = vmatprep.subr.mxu0 0.0
    %647 = vmatpush1.msra.mxu0 0.0
    %648 = vmatprep.mubr.f32.mxu0 0.0
    %649 = vmatmul.mubr.f32.gmra.mrb[0].mxu0 %v564
    %v650 = vpop.f32.mrb[0].mxu0
    %v651 = vadd.f32 %v563, %v650
    %v652 = vpop.f32.mrb[0].mxu0
    %653 = vmatprep.mubr.f32.mxu0 0.0
    %654 = vmatmul.mubr.f32.gmra.mrb[0].mxu0 %v566
    %v655 = vpop.f32.mrb[0].mxu0
    %v656 = vadd.f32 %v563, %v655
    %v657 = vpop.f32.mrb[0].mxu0
    %658 = vmatprep.mubr.f32.mxu0 0.0
    %659 = vmatmul.mubr.f32.gmra.mrb[0].mxu0 %v568
    %v660 = vpop.f32.mrb[0].mxu0
    %v661 = vadd.f32 %v563, %v660
    %v662 = vpop.f32.mrb[0].mxu0
    %663 = vmatprep.mubr.f32.mxu0 0.0
    %664 = vmatmul.mubr.f32.gmra.mrb[0].mxu0 %v570
    %v665 = vpop.f32.mrb[0].mxu0
    %v666 = vadd.f32 %v563, %v665
    %v667 = vpop.f32.mrb[0].mxu0
    %668 = vmatprep.mubr.f32.mxu0 0.0
    %669 = vmatmul.mubr.f32.gmra.mrb[0].mxu0 %v572
    %v670 = vpop.f32.mrb[0].mxu0
    %v671 = vadd.f32 %v563, %v670
    %v672 = vpop.f32.mrb[0].mxu0
    %673 = vmatprep.mubr.f32.mxu0 0.0
    %674 = vmatmul.mubr.f32.gmra.mrb[0].mxu0 %v574
    %v675 = vpop.f32.mrb[0].mxu0
    %v676 = vadd.f32 %v563, %v675
    %v677 = vpop.f32.mrb[0].mxu0
    %678 = vmatprep.mubr.f32.mxu0 0.0
    %679 = vmatmul.mubr.f32.gmra.mrb[0].mxu0 %v576
    %v680 = vpop.f32.mrb[0].mxu0
    %v681 = vadd.f32 %v563, %v680
    %v682 = vpop.f32.mrb[0].mxu0
    %683 = vmatprep.mubr.f32.mxu0 0.0
    %684 = vmatmul.mubr.f32.gmra.mrb[0].mxu0 %v578
    %v685 = vpop.f32.mrb[0].mxu0
    %v686 = vadd.f32 %v563, %v685
    %v687 = vpop.f32.mrb[0].mxu0
    %688 = vdwg.mxu0
    %v689 = vadd.f32 %v550, %v651
    %v690 = vadd.f32 %v551, %v656
    %v691 = vadd.f32 %v552, %v661
    %v692 = vadd.f32 %v553, %v666
    %v693 = vadd.f32 %v554, %v671
    %v694 = vadd.f32 %v555, %v676
    %v695 = vadd.f32 %v556, %v681
    %v696 = vadd.f32 %v557, %v686
    %v697 = vmax.f32 %v689, 0.0
    %v698 = vmax.f32 %v690, 0.0
    %v699 = vmax.f32 %v691, 0.0
    %v700 = vmax.f32 %v692, 0.0
    %v701 = vmax.f32 %v693, 0.0
    %v702 = vmax.f32 %v694, 0.0
    %v703 = vmax.f32 %v695, 0.0
    %v704 = vmax.f32 %v696, 0.0
    %v705 = vld [vmem:[%s2] sm:$0xff]
    %v706 = vld [vmem:[%s2 + $0x8] sm:$0xff]
    %v707 = vld [vmem:[%s2 + $0x10] sm:$0x1]
    %v708 = vld [vmem:[%s2 + $0x11] sm:$0xff]
    %v709 = vld [vmem:[%s2 + $0x19] sm:$0xff]
    %v710 = vld [vmem:[%s2 + $0x21] sm:$0x1]
    %vm719 = vcmask 1041408
    %v720 = vrot.slane %v697, 6
    %v721 = vrot.slane %v698, 6
    %v722 = vsel %vm719, %v720, %v721
    %v723 = vrot.slane %v699, 6
    %v724 = vsel %vm719, %v721, %v723
    %v725 = vrot.slane %v700, 6
    %v726 = vsel %vm719, %v723, %v725
    %v727 = vrot.slane %v701, 6
    %v728 = vsel %vm719, %v725, %v727
    %v729 = vrot.slane %v702, 6
    %v730 = vsel %vm719, %v727, %v729
    %v731 = vrot.slane %v703, 6
    %v732 = vsel %vm719, %v729, %v731
    %v733 = vrot.slane %v704, 6
    %v734 = vsel %vm719, %v731, %v733
    %v743 = vsel %vm719, 0.0, %v720
    %vm744 = vcmp.ge.f32.partialorder %v67, 2.0
    %vm745 = vcmp.ge.f32.partialorder %v68, 2.0
    %vm746 = vcmp.ge.f32.partialorder %v69, 2.0
    %vm747 = vcmp.ge.f32.partialorder %v70, 2.0
    %vm748 = vcmp.ge.f32.partialorder %v71, 2.0
    %vm749 = vcmp.ge.f32.partialorder %v72, 2.0
    %vm750 = vcmp.ge.f32.partialorder %v73, 2.0
    %vm751 = vcmp.ge.f32.partialorder %v74, 2.0
    %v752 = vsel %vm744, 1, 0
    %v753 = vsel %vm745, 1, 0
    %v754 = vsel %vm746, 1, 0
    %v755 = vsel %vm747, 1, 0
    %v756 = vsel %vm748, 1, 0
    %v757 = vsel %vm749, 1, 0
    %v758 = vsel %vm750, 1, 0
    %v759 = vsel %vm751, 1, 0
    %vm760 = vcmp.eq.s32.totalorder %v752, 1
    %vm761 = vcmp.eq.s32.totalorder %v753, 1
    %vm762 = vcmp.eq.s32.totalorder %v754, 1
    %vm763 = vcmp.eq.s32.totalorder %v755, 1
    %vm764 = vcmp.eq.s32.totalorder %v756, 1
    %vm765 = vcmp.eq.s32.totalorder %v757, 1
    %vm766 = vcmp.eq.s32.totalorder %v758, 1
    %vm767 = vcmp.eq.s32.totalorder %v759, 1
    %v768 = vsel %vm760, %v743, 0.0
    %v769 = vsel %vm761, %v722, 0.0
    %v770 = vsel %vm762, %v724, 0.0
    %v771 = vsel %vm763, %v726, 0.0
    %v772 = vsel %vm764, %v728, 0.0
    %v773 = vsel %vm765, %v730, 0.0
    %v774 = vsel %vm766, %v732, 0.0
    %v775 = vsel %vm767, %v734, 0.0
    %776 = vrot.lane.b32.xlu0 %v697, 8
    %v777 = vpop.permute.xlu0 %776
    %778 = vrot.lane.b32.xlu0 %v698, 8
    %v779 = vpop.permute.xlu0 %778
    %780 = vrot.lane.b32.xlu0 %v699, 8
    %v781 = vpop.permute.xlu0 %780
    %782 = vrot.lane.b32.xlu0 %v700, 8
    %v783 = vpop.permute.xlu0 %782
    %784 = vrot.lane.b32.xlu0 %v701, 8
    %v785 = vpop.permute.xlu0 %784
    %786 = vrot.lane.b32.xlu0 %v702, 8
    %v787 = vpop.permute.xlu0 %786
    %788 = vrot.lane.b32.xlu0 %v703, 8
    %v789 = vpop.permute.xlu0 %788
    %790 = vrot.lane.b32.xlu0 %v704, 8
    %v791 = vpop.permute.xlu0 %790
    %v800 = vsel %vm206, %v768, %v777
    %v801 = vsel %vm206, %v769, %v779
    %v802 = vsel %vm206, %v770, %v781
    %v803 = vsel %vm206, %v771, %v783
    %v804 = vsel %vm206, %v772, %v785
    %v805 = vsel %vm206, %v773, %v787
    %v806 = vsel %vm206, %v774, %v789
    %v807 = vsel %vm206, %v775, %v791
    %v808 = vlaneseq
    %v809 = vshrl.u32 %v808, 7
    %v810 = vsub.s32 0, %v809
    %v811 = vrot.slane %v707, %v810
    %v813 = vsel %vm420, %v800, 0
    %v816 = vsel %vm420, %v801, 0
    %v819 = vsel %vm420, %v802, 0
    %v822 = vsel %vm420, %v803, 0
    %v825 = vsel %vm420, %v804, 0
    %v828 = vsel %vm420, %v805, 0
    %v831 = vsel %vm420, %v806, 0
    %v834 = vsel %vm420, %v807, 0
    %836 = vmatprep.subr.mxu0 0.0
    %837 = vmatpush1.msra.mxu0 %v705
    %838 = vmatprep.subr.mxu0 0.0
    %839 = vmatpush1.msra.mxu0 %v706
    %840 = vmatprep.subr.mxu0 0.0
    %841 = vmatpush1.msra.mxu0 0.0
    %842 = vmatprep.subr.mxu0 0.0
    %843 = vmatpush1.msra.mxu0 0.0
    %844 = vmatprep.subr.mxu0 0.0
    %845 = vmatpush1.msra.mxu0 0.0
    %846 = vmatprep.subr.mxu0 0.0
    %847 = vmatpush1.msra.mxu0 0.0
    %848 = vmatprep.subr.mxu0 0.0
    %849 = vmatpush1.msra.mxu0 0.0
    %850 = vmatprep.subr.mxu0 0.0
    %851 = vmatpush1.msra.mxu0 0.0
    %852 = vmatprep.subr.mxu0 0.0
    %853 = vmatpush1.msra.mxu0 0.0
    %854 = vmatprep.subr.mxu0 0.0
    %855 = vmatpush1.msra.mxu0 0.0
    %856 = vmatprep.subr.mxu0 0.0
    %857 = vmatpush1.msra.mxu0 0.0
    %858 = vmatprep.subr.mxu0 0.0
    %859 = vmatpush1.msra.mxu0 0.0
    %860 = vmatprep.subr.mxu0 0.0
    %861 = vmatpush1.msra.mxu0 0.0
    %862 = vmatprep.subr.mxu0 0.0
    %863 = vmatpush1.msra.mxu0 0.0
    %864 = vmatprep.subr.mxu0 0.0
    %865 = vmatpush1.msra.mxu0 0.0
    %866 = vmatprep.subr.mxu0 0.0
    %867 = vmatpush1.msra.mxu0 0.0
    %868 = vmatprep.subr.mxu0 0.0
    %869 = vmatpush1.msra.mxu0 0.0
    %870 = vmatprep.subr.mxu0 0.0
    %871 = vmatpush1.msra.mxu0 0.0
    %872 = vmatprep.subr.mxu0 0.0
    %873 = vmatpush1.msra.mxu0 0.0
    %874 = vmatprep.subr.mxu0 0.0
    %875 = vmatpush1.msra.mxu0 0.0
    %876 = vmatprep.subr.mxu0 0.0
    %877 = vmatpush1.msra.mxu0 0.0
    %878 = vmatprep.subr.mxu0 0.0
    %879 = vmatpush1.msra.mxu0 0.0
    %880 = vmatprep.subr.mxu0 0.0
    %881 = vmatpush1.msra.mxu0 0.0
    %882 = vmatprep.subr.mxu0 0.0
    %883 = vmatpush1.msra.mxu0 0.0
    %884 = vmatprep.subr.mxu0 0.0
    %885 = vmatpush1.msra.mxu0 0.0
    %886 = vmatprep.subr.mxu0 0.0
    %887 = vmatpush1.msra.mxu0 0.0
    %888 = vmatprep.subr.mxu0 0.0
    %889 = vmatpush1.msra.mxu0 0.0
    %890 = vmatprep.subr.mxu0 0.0
    %891 = vmatpush1.msra.mxu0 0.0
    %892 = vmatprep.subr.mxu0 0.0
    %893 = vmatpush1.msra.mxu0 0.0
    %894 = vmatprep.subr.mxu0 0.0
    %895 = vmatpush1.msra.mxu0 0.0
    %896 = vmatprep.subr.mxu0 0.0
    %897 = vmatpush1.msra.mxu0 0.0
    %898 = vmatprep.subr.mxu0 0.0
    %899 = vmatpush1.msra.mxu0 0.0
    %900 = vmatprep.mubr.f32.mxu0 0.0
    %901 = vmatmul.mubr.f32.gmra.mrb[0].mxu0 %v813
    %v902 = vpop.f32.mrb[0].mxu0
    %v903 = vadd.f32 %v811, %v902
    %v904 = vpop.f32.mrb[0].mxu0
    %905 = vmatprep.mubr.f32.mxu0 0.0
    %906 = vmatmul.mubr.f32.gmra.mrb[0].mxu0 %v816
    %v907 = vpop.f32.mrb[0].mxu0
    %v908 = vadd.f32 %v811, %v907
    %v909 = vpop.f32.mrb[0].mxu0
    %910 = vmatprep.mubr.f32.mxu0 0.0
    %911 = vmatmul.mubr.f32.gmra.mrb[0].mxu0 %v819
    %v912 = vpop.f32.mrb[0].mxu0
    %v913 = vadd.f32 %v811, %v912
    %v914 = vpop.f32.mrb[0].mxu0
    %915 = vmatprep.mubr.f32.mxu0 0.0
    %916 = vmatmul.mubr.f32.gmra.mrb[0].mxu0 %v822
    %v917 = vpop.f32.mrb[0].mxu0
    %v918 = vadd.f32 %v811, %v917
    %v919 = vpop.f32.mrb[0].mxu0
    %920 = vmatprep.mubr.f32.mxu0 0.0
    %921 = vmatmul.mubr.f32.gmra.mrb[0].mxu0 %v825
    %v922 = vpop.f32.mrb[0].mxu0
    %v923 = vadd.f32 %v811, %v922
    %v924 = vpop.f32.mrb[0].mxu0
    %925 = vmatprep.mubr.f32.mxu0 0.0
    %926 = vmatmul.mubr.f32.gmra.mrb[0].mxu0 %v828
    %v927 = vpop.f32.mrb[0].mxu0
    %v928 = vadd.f32 %v811, %v927
    %v929 = vpop.f32.mrb[0].mxu0
    %930 = vmatprep.mubr.f32.mxu0 0.0
    %931 = vmatmul.mubr.f32.gmra.mrb[0].mxu0 %v831
    %v932 = vpop.f32.mrb[0].mxu0
    %v933 = vadd.f32 %v811, %v932
    %v934 = vpop.f32.mrb[0].mxu0
    %935 = vmatprep.mubr.f32.mxu0 0.0
    %936 = vmatmul.mubr.f32.gmra.mrb[0].mxu0 %v834
    %v937 = vpop.f32.mrb[0].mxu0
    %v938 = vadd.f32 %v811, %v937
    %v939 = vpop.f32.mrb[0].mxu0
    %940 = vdwg.mxu0
    %v941 = vmax.f32 %v903, 0.0
    %v942 = vmax.f32 %v908, 0.0
    %v943 = vmax.f32 %v913, 0.0
    %v944 = vmax.f32 %v918, 0.0
    %v945 = vmax.f32 %v923, 0.0
    %v946 = vmax.f32 %v928, 0.0
    %v947 = vmax.f32 %v933, 0.0
    %v948 = vmax.f32 %v938, 0.0
    %v957 = vrot.slane %v941, 6
    %v958 = vrot.slane %v942, 6
    %v959 = vsel %vm719, %v957, %v958
    %v960 = vrot.slane %v943, 6
    %v961 = vsel %vm719, %v958, %v960
    %v962 = vrot.slane %v944, 6
    %v963 = vsel %vm719, %v960, %v962
    %v964 = vrot.slane %v945, 6
    %v965 = vsel %vm719, %v962, %v964
    %v966 = vrot.slane %v946, 6
    %v967 = vsel %vm719, %v964, %v966
    %v968 = vrot.slane %v947, 6
    %v969 = vsel %vm719, %v966, %v968
    %v970 = vrot.slane %v948, 6
    %v971 = vsel %vm719, %v968, %v970
    %v980 = vsel %vm719, 0.0, %v957
    %v981 = vsel %vm760, %v980, 0.0
    %v982 = vsel %vm761, %v959, 0.0
    %v983 = vsel %vm762, %v961, 0.0
    %v984 = vsel %vm763, %v963, 0.0
    %v985 = vsel %vm764, %v965, 0.0
    %v986 = vsel %vm765, %v967, 0.0
    %v987 = vsel %vm766, %v969, 0.0
    %v988 = vsel %vm767, %v971, 0.0
    %989 = vrot.lane.b32.xlu0 %v941, 8
    %v990 = vpop.permute.xlu0 %989
    %991 = vrot.lane.b32.xlu0 %v942, 8
    %v992 = vpop.permute.xlu0 %991
    %993 = vrot.lane.b32.xlu0 %v943, 8
    %v994 = vpop.permute.xlu0 %993
    %995 = vrot.lane.b32.xlu0 %v944, 8
    %v996 = vpop.permute.xlu0 %995
    %997 = vrot.lane.b32.xlu0 %v945, 8
    %v998 = vpop.permute.xlu0 %997
    %999 = vrot.lane.b32.xlu0 %v946, 8
    %v1000 = vpop.permute.xlu0 %999
    %1001 = vrot.lane.b32.xlu0 %v947, 8
    %v1002 = vpop.permute.xlu0 %1001
    %1003 = vrot.lane.b32.xlu0 %v948, 8
    %v1004 = vpop.permute.xlu0 %1003
    %v1013 = vsel %vm206, %v981, %v990
    %v1014 = vsel %vm206, %v982, %v992
    %v1015 = vsel %vm206, %v983, %v994
    %v1016 = vsel %vm206, %v984, %v996
    %v1017 = vsel %vm206, %v985, %v998
    %v1018 = vsel %vm206, %v986, %v1000
    %v1019 = vsel %vm206, %v987, %v1002
    %v1020 = vsel %vm206, %v988, %v1004
    %v1021 = vlaneseq
    %v1022 = vshrl.u32 %v1021, 7
    %v1023 = vsub.s32 0, %v1022
    %v1024 = vrot.slane %v710, %v1023
    %v1026 = vsel %vm420, %v1013, 0
    %v1029 = vsel %vm420, %v1014, 0
    %v1032 = vsel %vm420, %v1015, 0
    %v1035 = vsel %vm420, %v1016, 0
    %v1038 = vsel %vm420, %v1017, 0
    %v1041 = vsel %vm420, %v1018, 0
    %v1044 = vsel %vm420, %v1019, 0
    %v1047 = vsel %vm420, %v1020, 0
    %1049 = vmatprep.subr.mxu0 0.0
    %1050 = vmatpush1.msra.mxu0 %v708
    %1051 = vmatprep.subr.mxu0 0.0
    %1052 = vmatpush1.msra.mxu0 %v709
    %1053 = vmatprep.subr.mxu0 0.0
    %1054 = vmatpush1.msra.mxu0 0.0
    %1055 = vmatprep.subr.mxu0 0.0
    %1056 = vmatpush1.msra.mxu0 0.0
    %1057 = vmatprep.subr.mxu0 0.0
    %1058 = vmatpush1.msra.mxu0 0.0
    %1059 = vmatprep.subr.mxu0 0.0
    %1060 = vmatpush1.msra.mxu0 0.0
    %1061 = vmatprep.subr.mxu0 0.0
    %1062 = vmatpush1.msra.mxu0 0.0
    %1063 = vmatprep.subr.mxu0 0.0
    %1064 = vmatpush1.msra.mxu0 0.0
    %1065 = vmatprep.subr.mxu0 0.0
    %1066 = vmatpush1.msra.mxu0 0.0
    %1067 = vmatprep.subr.mxu0 0.0
    %1068 = vmatpush1.msra.mxu0 0.0
    %1069 = vmatprep.subr.mxu0 0.0
    %1070 = vmatpush1.msra.mxu0 0.0
    %1071 = vmatprep.subr.mxu0 0.0
    %1072 = vmatpush1.msra.mxu0 0.0
    %1073 = vmatprep.subr.mxu0 0.0
    %1074 = vmatpush1.msra.mxu0 0.0
    %1075 = vmatprep.subr.mxu0 0.0
    %1076 = vmatpush1.msra.mxu0 0.0
    %1077 = vmatprep.subr.mxu0 0.0
    %1078 = vmatpush1.msra.mxu0 0.0
    %1079 = vmatprep.subr.mxu0 0.0
    %1080 = vmatpush1.msra.mxu0 0.0
    %1081 = vmatprep.subr.mxu0 0.0
    %1082 = vmatpush1.msra.mxu0 0.0
    %1083 = vmatprep.subr.mxu0 0.0
    %1084 = vmatpush1.msra.mxu0 0.0
    %1085 = vmatprep.subr.mxu0 0.0
    %1086 = vmatpush1.msra.mxu0 0.0
    %1087 = vmatprep.subr.mxu0 0.0
    %1088 = vmatpush1.msra.mxu0 0.0
    %1089 = vmatprep.subr.mxu0 0.0
    %1090 = vmatpush1.msra.mxu0 0.0
    %1091 = vmatprep.subr.mxu0 0.0
    %1092 = vmatpush1.msra.mxu0 0.0
    %1093 = vmatprep.subr.mxu0 0.0
    %1094 = vmatpush1.msra.mxu0 0.0
    %1095 = vmatprep.subr.mxu0 0.0
    %1096 = vmatpush1.msra.mxu0 0.0
    %1097 = vmatprep.subr.mxu0 0.0
    %1098 = vmatpush1.msra.mxu0 0.0
    %1099 = vmatprep.subr.mxu0 0.0
    %1100 = vmatpush1.msra.mxu0 0.0
    %1101 = vmatprep.subr.mxu0 0.0
    %1102 = vmatpush1.msra.mxu0 0.0
    %1103 = vmatprep.subr.mxu0 0.0
    %1104 = vmatpush1.msra.mxu0 0.0
    %1105 = vmatprep.subr.mxu0 0.0
    %1106 = vmatpush1.msra.mxu0 0.0
    %1107 = vmatprep.subr.mxu0 0.0
    %1108 = vmatpush1.msra.mxu0 0.0
    %1109 = vmatprep.subr.mxu0 0.0
    %1110 = vmatpush1.msra.mxu0 0.0
    %1111 = vmatprep.subr.mxu0 0.0
    %1112 = vmatpush1.msra.mxu0 0.0
    %1113 = vmatprep.mubr.f32.mxu0 0.0
    %1114 = vmatmul.mubr.f32.gmra.mrb[0].mxu0 %v1026
    %v1115 = vpop.f32.mrb[0].mxu0
    %v1116 = vadd.f32 %v1024, %v1115
    %v1117 = vpop.f32.mrb[0].mxu0
    %1118 = vmatprep.mubr.f32.mxu0 0.0
    %1119 = vmatmul.mubr.f32.gmra.mrb[0].mxu0 %v1029
    %v1120 = vpop.f32.mrb[0].mxu0
    %v1121 = vadd.f32 %v1024, %v1120
    %v1122 = vpop.f32.mrb[0].mxu0
    %1123 = vmatprep.mubr.f32.mxu0 0.0
    %1124 = vmatmul.mubr.f32.gmra.mrb[0].mxu0 %v1032
    %v1125 = vpop.f32.mrb[0].mxu0
    %v1126 = vadd.f32 %v1024, %v1125
    %v1127 = vpop.f32.mrb[0].mxu0
    %1128 = vmatprep.mubr.f32.mxu0 0.0
    %1129 = vmatmul.mubr.f32.gmra.mrb[0].mxu0 %v1035
    %v1130 = vpop.f32.mrb[0].mxu0
    %v1131 = vadd.f32 %v1024, %v1130
    %v1132 = vpop.f32.mrb[0].mxu0
    %1133 = vmatprep.mubr.f32.mxu0 0.0
    %1134 = vmatmul.mubr.f32.gmra.mrb[0].mxu0 %v1038
    %v1135 = vpop.f32.mrb[0].mxu0
    %v1136 = vadd.f32 %v1024, %v1135
    %v1137 = vpop.f32.mrb[0].mxu0
    %1138 = vmatprep.mubr.f32.mxu0 0.0
    %1139 = vmatmul.mubr.f32.gmra.mrb[0].mxu0 %v1041
    %v1140 = vpop.f32.mrb[0].mxu0
    %v1141 = vadd.f32 %v1024, %v1140
    %v1142 = vpop.f32.mrb[0].mxu0
    %1143 = vmatprep.mubr.f32.mxu0 0.0
    %1144 = vmatmul.mubr.f32.gmra.mrb[0].mxu0 %v1044
    %v1145 = vpop.f32.mrb[0].mxu0
    %v1146 = vadd.f32 %v1024, %v1145
    %v1147 = vpop.f32.mrb[0].mxu0
    %1148 = vmatprep.mubr.f32.mxu0 0.0
    %1149 = vmatmul.mubr.f32.gmra.mrb[0].mxu0 %v1047
    %v1150 = vpop.f32.mrb[0].mxu0
    %v1151 = vadd.f32 %v1024, %v1150
    %v1152 = vpop.f32.mrb[0].mxu0
    %1153 = vdwg.mxu0
    %v1154 = vmax.f32 %v1116, 0.0
    %v1155 = vmax.f32 %v1121, 0.0
    %v1156 = vmax.f32 %v1126, 0.0
    %v1157 = vmax.f32 %v1131, 0.0
    %v1158 = vmax.f32 %v1136, 0.0
    %v1159 = vmax.f32 %v1141, 0.0
    %v1160 = vmax.f32 %v1146, 0.0
    %v1161 = vmax.f32 %v1151, 0.0
    %v1162 = vadd.f32 %v1154, %v697
    %v1163 = vadd.f32 %v1155, %v698
    %v1164 = vadd.f32 %v1156, %v699
    %v1165 = vadd.f32 %v1157, %v700
    %v1166 = vadd.f32 %v1158, %v701
    %v1167 = vadd.f32 %v1159, %v702
    %v1168 = vadd.f32 %v1160, %v703
    %v1169 = vadd.f32 %v1161, %v704
    %v1170 = vmax.f32 %v1162, 0.0
    %v1171 = vmax.f32 %v1163, 0.0
    %v1172 = vmax.f32 %v1164, 0.0
    %v1173 = vmax.f32 %v1165, 0.0
    %v1174 = vmax.f32 %v1166, 0.0
    %v1175 = vmax.f32 %v1167, 0.0
    %v1176 = vmax.f32 %v1168, 0.0
    %v1177 = vmax.f32 %v1169, 0.0
    %1186 = vrot.lane.b32.xlu0 %v1170, 8
    %v1187 = vpop.permute.xlu0 %1186
    %1188 = vrot.lane.b32.xlu0 %v1171, 8
    %v1189 = vpop.permute.xlu0 %1188
    %1190 = vrot.lane.b32.xlu0 %v1172, 8
    %v1191 = vpop.permute.xlu0 %1190
    %1192 = vrot.lane.b32.xlu0 %v1173, 8
    %v1193 = vpop.permute.xlu0 %1192
    %1194 = vrot.lane.b32.xlu0 %v1174, 8
    %v1195 = vpop.permute.xlu0 %1194
    %1196 = vrot.lane.b32.xlu0 %v1175, 8
    %v1197 = vpop.permute.xlu0 %1196
    %1198 = vrot.lane.b32.xlu0 %v1176, 8
    %v1199 = vpop.permute.xlu0 %1198
    %1200 = vrot.lane.b32.xlu0 %v1177, 8
    %v1201 = vpop.permute.xlu0 %1200
    %v1210 = vsel %vm206, %v1170, %v1187
    %v1211 = vsel %vm206, %v1171, %v1189
    %v1212 = vsel %vm206, %v1172, %v1191
    %v1213 = vsel %vm206, %v1173, %v1193
    %v1214 = vsel %vm206, %v1174, %v1195
    %v1215 = vsel %vm206, %v1175, %v1197
    %v1216 = vsel %vm206, %v1176, %v1199
    %v1217 = vsel %vm206, %v1177, %v1201
    %1226 = vrot.lane.b32.xlu0 %v1210, 16
    %v1227 = vpop.permute.xlu0 %1226
    %1228 = vrot.lane.b32.xlu0 %v1211, 16
    %v1229 = vpop.permute.xlu0 %1228
    %1230 = vrot.lane.b32.xlu0 %v1212, 16
    %v1231 = vpop.permute.xlu0 %1230
    %1232 = vrot.lane.b32.xlu0 %v1213, 16
    %v1233 = vpop.permute.xlu0 %1232
    %1234 = vrot.lane.b32.xlu0 %v1214, 16
    %v1235 = vpop.permute.xlu0 %1234
    %1236 = vrot.lane.b32.xlu0 %v1215, 16
    %v1237 = vpop.permute.xlu0 %1236
    %1238 = vrot.lane.b32.xlu0 %v1216, 16
    %v1239 = vpop.permute.xlu0 %1238
    %1240 = vrot.lane.b32.xlu0 %v1217, 16
    %v1241 = vpop.permute.xlu0 %1240
    %v1250 = vsel %vm420, %v1210, %v1227
    %v1251 = vsel %vm420, %v1211, %v1229
    %v1252 = vsel %vm420, %v1212, %v1231
    %v1253 = vsel %vm420, %v1213, %v1233
    %v1254 = vsel %vm420, %v1214, %v1235
    %v1255 = vsel %vm420, %v1215, %v1237
    %v1256 = vsel %vm420, %v1216, %v1239
    %v1257 = vsel %vm420, %v1217, %v1241
    %1266 = vrot.lane.b32.xlu0 %v1250, 32
    %v1267 = vpop.permute.xlu0 %1266
    %1268 = vrot.lane.b32.xlu0 %v1251, 32
    %v1269 = vpop.permute.xlu0 %1268
    %1270 = vrot.lane.b32.xlu0 %v1252, 32
    %v1271 = vpop.permute.xlu0 %1270
    %1272 = vrot.lane.b32.xlu0 %v1253, 32
    %v1273 = vpop.permute.xlu0 %1272
    %1274 = vrot.lane.b32.xlu0 %v1254, 32
    %v1275 = vpop.permute.xlu0 %1274
    %1276 = vrot.lane.b32.xlu0 %v1255, 32
    %v1277 = vpop.permute.xlu0 %1276
    %1278 = vrot.lane.b32.xlu0 %v1256, 32
    %v1279 = vpop.permute.xlu0 %1278
    %1280 = vrot.lane.b32.xlu0 %v1257, 32
    %v1281 = vpop.permute.xlu0 %1280
    %vm1290 = vcmask 261120
    %v1291 = vsel %vm1290, %v1250, %v1267
    %v1292 = vsel %vm1290, %v1251, %v1269
    %v1293 = vsel %vm1290, %v1252, %v1271
    %v1294 = vsel %vm1290, %v1253, %v1273
    %v1295 = vsel %vm1290, %v1254, %v1275
    %v1296 = vsel %vm1290, %v1255, %v1277
    %v1297 = vsel %vm1290, %v1256, %v1279
    %v1298 = vsel %vm1290, %v1257, %v1281
    %1307 = vrot.lane.b32.xlu0 %v1291, 64
    %v1308 = vpop.permute.xlu0 %1307
    %1309 = vrot.lane.b32.xlu0 %v1292, 64
    %v1310 = vpop.permute.xlu0 %1309
    %1311 = vrot.lane.b32.xlu0 %v1293, 64
    %v1312 = vpop.permute.xlu0 %1311
    %1313 = vrot.lane.b32.xlu0 %v1294, 64
    %v1314 = vpop.permute.xlu0 %1313
    %1315 = vrot.lane.b32.xlu0 %v1295, 64
    %v1316 = vpop.permute.xlu0 %1315
    %1317 = vrot.lane.b32.xlu0 %v1296, 64
    %v1318 = vpop.permute.xlu0 %1317
    %1319 = vrot.lane.b32.xlu0 %v1297, 64
    %v1320 = vpop.permute.xlu0 %1319
    %1321 = vrot.lane.b32.xlu0 %v1298, 64
    %v1322 = vpop.permute.xlu0 %1321
    %vm1331 = vcmask 523264
    %v1332 = vsel %vm1331, %v1291, %v1308
    %v1333 = vsel %vm1331, %v1292, %v1310
    %v1334 = vsel %vm1331, %v1293, %v1312
    %v1335 = vsel %vm1331, %v1294, %v1314
    %v1336 = vsel %vm1331, %v1295, %v1316
    %v1337 = vsel %vm1331, %v1296, %v1318
    %v1338 = vsel %vm1331, %v1297, %v1320
    %v1339 = vsel %vm1331, %v1298, %v1322
    %v1340 = vmul.f32 %v83, 16.0
    %v1341 = vmul.f32 %v84, 16.0
    %v1342 = vmul.f32 %v85, 16.0
    %v1343 = vmul.f32 %v86, 16.0
    %v1344 = vmul.f32 %v87, 16.0
    %v1345 = vmul.f32 %v88, 16.0
    %v1346 = vmul.f32 %v89, 16.0
    %v1347 = vmul.f32 %v90, 16.0
    %v1348 = vadd.f32 %v1340, %v67
    %v1349 = vadd.f32 %v1341, %v68
    %v1350 = vadd.f32 %v1342, %v69
    %v1351 = vadd.f32 %v1343, %v70
    %v1352 = vadd.f32 %v1344, %v71
    %v1353 = vadd.f32 %v1345, %v72
    %v1354 = vadd.f32 %v1346, %v73
    %v1355 = vadd.f32 %v1347, %v74
    %v1356 = vlaneseq
    %v1357 = vand.u32 %v1356, 127
    %v1358 = vadd.s32 %v1357, 128
    %v1359 = vcvt.s32.f32 %v1357
    %v1360 = vcvt.s32.f32 %v1358
    %v1361 = vadd.f32 %v1359, 0.5
    %v1362 = vadd.f32 %v1360, 0.5
    %v1363 = vmul.f32 %v1361, 0.125
    %v1364 = vmul.f32 %v1362, 0.125
    %v1365 = vfloor.f32 %v1363
    %v1366 = vfloor.f32 %v1364
    %vm1367 = vcmp.eq.f32.partialorder %v1348, %v1365
    %vm1368 = vcmp.eq.f32.partialorder %v1348, %v1366
    %vm1369 = vcmp.eq.f32.partialorder %v1349, %v1365
    %vm1370 = vcmp.eq.f32.partialorder %v1349, %v1366
    %vm1371 = vcmp.eq.f32.partialorder %v1350, %v1365
    %vm1372 = vcmp.eq.f32.partialorder %v1350, %v1366
    %vm1373 = vcmp.eq.f32.partialorder %v1351, %v1365
    %vm1374 = vcmp.eq.f32.partialorder %v1351, %v1366
    %vm1375 = vcmp.eq.f32.partialorder %v1352, %v1365
    %vm1376 = vcmp.eq.f32.partialorder %v1352, %v1366
    %vm1377 = vcmp.eq.f32.partialorder %v1353, %v1365
    %vm1378 = vcmp.eq.f32.partialorder %v1353, %v1366
    %vm1379 = vcmp.eq.f32.partialorder %v1354, %v1365
    %vm1380 = vcmp.eq.f32.partialorder %v1354, %v1366
    %vm1381 = vcmp.eq.f32.partialorder %v1355, %v1365
    %vm1382 = vcmp.eq.f32.partialorder %v1355, %v1366
    %v1383 = vsel %vm1367, %v1332, 0.0
    %v1384 = vsel %vm1368, %v1332, 0.0
    %v1385 = vsel %vm1369, %v1333, 0.0
    %v1386 = vsel %vm1370, %v1333, 0.0
    %v1387 = vsel %vm1371, %v1334, 0.0
    %v1388 = vsel %vm1372, %v1334, 0.0
    %v1389 = vsel %vm1373, %v1335, 0.0
    %v1390 = vsel %vm1374, %v1335, 0.0
    %v1391 = vsel %vm1375, %v1336, 0.0
    %v1392 = vsel %vm1376, %v1336, 0.0
    %v1393 = vsel %vm1377, %v1337, 0.0
    %v1394 = vsel %vm1378, %v1337, 0.0
    %v1395 = vsel %vm1379, %v1338, 0.0
    %v1396 = vsel %vm1380, %v1338, 0.0
    %v1397 = vsel %vm1381, %v1339, 0.0
    %v1398 = vsel %vm1382, %v1339, 0.0
    %v1399 = vmul.f32 %v1361, 0.0625
    %v1400 = vfloor.f32 %v1399
    %v1401 = vadd.f32 %v1400, 0.5
    %v1402 = vmul.f32 %v1401, 0.5
    %v1403 = vfloor.f32 %v1402
    %v1404 = vmul.f32 %v1403, 2.0
    %v1405 = vsub.f32 %v1400, %v1404
    %vm1406 = vcmp.eq.f32.partialorder %v27, %v1405
    %v1407 = vsel %vm1406, 1.0, 0.0
    %v1409 = vsel %vm1331, %v1407, 0
    %1411 = vmatprep.subr.mxu0 %v1384
    %1412 = vmatpush1.msra.mxu0 %v1383
    %1413 = vmatprep.subr.mxu0 %v1386
    %1414 = vmatpush1.msra.mxu0 %v1385
    %1415 = vmatprep.subr.mxu0 %v1388
    %1416 = vmatpush1.msra.mxu0 %v1387
    %1417 = vmatprep.subr.mxu0 %v1390
    %1418 = vmatpush1.msra.mxu0 %v1389
    %1419 = vmatprep.subr.mxu0 %v1392
    %1420 = vmatpush1.msra.mxu0 %v1391
    %1421 = vmatprep.subr.mxu0 %v1394
    %1422 = vmatpush1.msra.mxu0 %v1393
    %1423 = vmatprep.subr.mxu0 %v1396
    %1424 = vmatpush1.msra.mxu0 %v1395
    %1425 = vmatprep.subr.mxu0 %v1398
    %1426 = vmatpush1.msra.mxu0 %v1397
    %1427 = vmatprep.subr.mxu0 0.0
    %1428 = vmatpush1.msra.mxu0 0.0
    %1429 = vmatprep.subr.mxu0 0.0
    %1430 = vmatpush1.msra.mxu0 0.0
    %1431 = vmatprep.subr.mxu0 0.0
    %1432 = vmatpush1.msra.mxu0 0.0
    %1433 = vmatprep.subr.mxu0 0.0
    %1434 = vmatpush1.msra.mxu0 0.0
    %1435 = vmatprep.subr.mxu0 0.0
    %1436 = vmatpush1.msra.mxu0 0.0
    %1437 = vmatprep.subr.mxu0 0.0
    %1438 = vmatpush1.msra.mxu0 0.0
    %1439 = vmatprep.subr.mxu0 0.0
    %1440 = vmatpush1.msra.mxu0 0.0
    %1441 = vmatprep.subr.mxu0 0.0
    %1442 = vmatpush1.msra.mxu0 0.0
    %1443 = vmatprep.subr.mxu0 0.0
    %1444 = vmatpush1.msra.mxu0 0.0
    %1445 = vmatprep.subr.mxu0 0.0
    %1446 = vmatpush1.msra.mxu0 0.0
    %1447 = vmatprep.subr.mxu0 0.0
    %1448 = vmatpush1.msra.mxu0 0.0
    %1449 = vmatprep.subr.mxu0 0.0
    %1450 = vmatpush1.msra.mxu0 0.0
    %1451 = vmatprep.subr.mxu0 0.0
    %1452 = vmatpush1.msra.mxu0 0.0
    %1453 = vmatprep.subr.mxu0 0.0
    %1454 = vmatpush1.msra.mxu0 0.0
    %1455 = vmatprep.subr.mxu0 0.0
    %1456 = vmatpush1.msra.mxu0 0.0
    %1457 = vmatprep.subr.mxu0 0.0
    %1458 = vmatpush1.msra.mxu0 0.0
    %1459 = vmatprep.subr.mxu0 0.0
    %1460 = vmatpush1.msra.mxu0 0.0
    %1461 = vmatprep.subr.mxu0 0.0
    %1462 = vmatpush1.msra.mxu0 0.0
    %1463 = vmatprep.subr.mxu0 0.0
    %1464 = vmatpush1.msra.mxu0 0.0
    %1465 = vmatprep.subr.mxu0 0.0
    %1466 = vmatpush1.msra.mxu0 0.0
    %1467 = vmatprep.subr.mxu0 0.0
    %1468 = vmatpush1.msra.mxu0 0.0
    %1469 = vmatprep.subr.mxu0 0.0
    %1470 = vmatpush1.msra.mxu0 0.0
    %1471 = vmatprep.subr.mxu0 0.0
    %1472 = vmatpush1.msra.mxu0 0.0
    %1473 = vmatprep.subr.mxu0 0.0
    %1474 = vmatpush1.msra.mxu0 0.0
    %1475 = vmatprep.mubr.f32.mxu0 0.0
    %1476 = vmatmul.mubr.f32.gmra.mrb[0].mxu0 %v1409
    %v1477 = vpop.f32.mrb[0].mxu0
    %v1478 = vadd.f32 0.0, %v1477
    %v1479 = vpop.f32.mrb[0].mxu0
    %v1480 = vadd.f32 0.0, %v1479
    %1481 = vdwg.mxu0
    %v1482 = vld [vmem:[%s3] sm:$0xff]
    %v1483 = vld [vmem:[%s3 + $0x8] sm:$0xff]
    %v1484 = vld [vmem:[%s3 + $0x10] sm:$0xff]
    %v1485 = vld [vmem:[%s3 + $0x18] sm:$0xff]
    %v1486 = vld [vmem:[%s3 + $0x20] sm:$0xff]
    %v1487 = vld [vmem:[%s3 + $0x28] sm:$0xff]
    %v1488 = vld [vmem:[%s3 + $0x30] sm:$0xff]
    %v1489 = vld [vmem:[%s3 + $0x38] sm:$0xff]
    %v1490 = vld [vmem:[%s3 + $0x40] sm:$0xff]
    %v1491 = vld [vmem:[%s3 + $0x48] sm:$0xff]
    %v1492 = vld [vmem:[%s3 + $0x50] sm:$0xff]
    %v1493 = vld [vmem:[%s3 + $0x58] sm:$0xff]
    %v1494 = vld [vmem:[%s3 + $0x60] sm:$0xff]
    %v1495 = vld [vmem:[%s3 + $0x68] sm:$0xff]
    %v1496 = vld [vmem:[%s3 + $0x70] sm:$0xff]
    %v1497 = vld [vmem:[%s3 + $0x78] sm:$0xff]
    %v1498 = vld [vmem:[%s3 + $0x80] sm:$0xff]
    %v1499 = vld [vmem:[%s3 + $0x88] sm:$0xff]
    %v1500 = vld [vmem:[%s3 + $0x90] sm:$0xff]
    %v1501 = vld [vmem:[%s3 + $0x98] sm:$0xff]
    %v1502 = vld [vmem:[%s3 + $0xa0] sm:$0xff]
    %v1503 = vld [vmem:[%s3 + $0xa8] sm:$0xff]
    %v1504 = vld [vmem:[%s3 + $0xb0] sm:$0xff]
    %v1505 = vld [vmem:[%s3 + $0xb8] sm:$0xff]
    %v1506 = vld [vmem:[%s3 + $0xc0] sm:$0xff]
    %v1507 = vld [vmem:[%s3 + $0xc8] sm:$0xff]
    %v1508 = vld [vmem:[%s3 + $0xd0] sm:$0xff]
    %v1509 = vld [vmem:[%s3 + $0xd8] sm:$0xff]
    %v1510 = vld [vmem:[%s3 + $0xe0] sm:$0xff]
    %v1511 = vld [vmem:[%s3 + $0xe8] sm:$0xff]
    %v1512 = vld [vmem:[%s3 + $0xf0] sm:$0xff]
    %v1513 = vld [vmem:[%s3 + $0xf8] sm:$0xff]
    %v1514 = vld [vmem:[%s3 + $0x100] sm:$0x1]
    %v1515 = vlaneseq
    %v1516 = vshrl.u32 %v1515, 7
    %v1517 = vsub.s32 0, %v1516
    %v1518 = vrot.slane %v1514, %v1517
    %1519 = vmatprep.subr.mxu0 0.0
    %1520 = vmatpush1.msra.mxu0 %v1482
    %1521 = vmatprep.subr.mxu0 0.0
    %1522 = vmatpush1.msra.mxu0 %v1483
    %1523 = vmatprep.subr.mxu0 0.0
    %1524 = vmatpush1.msra.mxu0 %v1484
    %1525 = vmatprep.subr.mxu0 0.0
    %1526 = vmatpush1.msra.mxu0 %v1485
    %1527 = vmatprep.subr.mxu0 0.0
    %1528 = vmatpush1.msra.mxu0 %v1486
    %1529 = vmatprep.subr.mxu0 0.0
    %1530 = vmatpush1.msra.mxu0 %v1487
    %1531 = vmatprep.subr.mxu0 0.0
    %1532 = vmatpush1.msra.mxu0 %v1488
    %1533 = vmatprep.subr.mxu0 0.0
    %1534 = vmatpush1.msra.mxu0 %v1489
    %1535 = vmatprep.subr.mxu0 0.0
    %1536 = vmatpush1.msra.mxu0 %v1490
    %1537 = vmatprep.subr.mxu0 0.0
    %1538 = vmatpush1.msra.mxu0 %v1491
    %1539 = vmatprep.subr.mxu0 0.0
    %1540 = vmatpush1.msra.mxu0 %v1492
    %1541 = vmatprep.subr.mxu0 0.0
    %1542 = vmatpush1.msra.mxu0 %v1493
    %1543 = vmatprep.subr.mxu0 0.0
    %1544 = vmatpush1.msra.mxu0 %v1494
    %1545 = vmatprep.subr.mxu0 0.0
    %1546 = vmatpush1.msra.mxu0 %v1495
    %1547 = vmatprep.subr.mxu0 0.0
    %1548 = vmatpush1.msra.mxu0 %v1496
    %1549 = vmatprep.subr.mxu0 0.0
    %1550 = vmatpush1.msra.mxu0 %v1497
    %1551 = vmatprep.subr.mxu0 0.0
    %1552 = vmatpush1.msra.mxu0 %v1498
    %1553 = vmatprep.subr.mxu0 0.0
    %1554 = vmatpush1.msra.mxu0 %v1499
    %1555 = vmatprep.subr.mxu0 0.0
    %1556 = vmatpush1.msra.mxu0 %v1500
    %1557 = vmatprep.subr.mxu0 0.0
    %1558 = vmatpush1.msra.mxu0 %v1501
    %1559 = vmatprep.subr.mxu0 0.0
    %1560 = vmatpush1.msra.mxu0 %v1502
    %1561 = vmatprep.subr.mxu0 0.0
    %1562 = vmatpush1.msra.mxu0 %v1503
    %1563 = vmatprep.subr.mxu0 0.0
    %1564 = vmatpush1.msra.mxu0 %v1504
    %1565 = vmatprep.subr.mxu0 0.0
    %1566 = vmatpush1.msra.mxu0 %v1505
    %1567 = vmatprep.subr.mxu0 0.0
    %1568 = vmatpush1.msra.mxu0 %v1506
    %1569 = vmatprep.subr.mxu0 0.0
    %1570 = vmatpush1.msra.mxu0 %v1507
    %1571 = vmatprep.subr.mxu0 0.0
    %1572 = vmatpush1.msra.mxu0 %v1508
    %1573 = vmatprep.subr.mxu0 0.0
    %1574 = vmatpush1.msra.mxu0 %v1509
    %1575 = vmatprep.subr.mxu0 0.0
    %1576 = vmatpush1.msra.mxu0 %v1510
    %1577 = vmatprep.subr.mxu0 0.0
    %1578 = vmatpush1.msra.mxu0 %v1511
    %1579 = vmatprep.subr.mxu0 0.0
    %1580 = vmatpush1.msra.mxu0 %v1512
    %1581 = vmatprep.subr.mxu0 0.0
    %1582 = vmatpush1.msra.mxu0 %v1513
    %1583 = vmatprep.mubr.f32.mxu0 %v1480
    %1584 = vmatmul.mubr.f32.gmra.mrb[0].mxu0 %v1478
    %v1585 = vpop.f32.mrb[0].mxu0
    %v1586 = vadd.f32 %v1518, %v1585
    %v1587 = vpop.f32.mrb[0].mxu0
    %1588 = vdwg.mxu0
    %vm1589 = vcmask 33792
    %1590 = vst.msk [vmem:[#allocation2] sm:$0x3] %vm1589, %v1586
    // Predicated region
    $region18: #{fwd.1} parent=1 // pred_check
      _
    $region19: #{fwd.1} parent=1 // pred_check_branch
      %1592 = sbr.rel (0) target = $region21
    $region20: #{fwd.1} parent=1 // pred_region
      %s1594 = ssub.s32 32, 32
      %1595 = vsyncadd [#allocation3], %s1594
      %s1597 = sshll.u32 [#allocation2], 4
      %s1598 = int_to_ptr.vmem [resolvable:$true] %s1597
      %1600 = dma.vmem_to_hbm [thread:$0]  %s1598, 32, %s4, [#allocation3]
    $region21: #{fwd.1} parent=1 // pred_fallthru
      _
    // Predicated region
    $region22: #{fwd.1} parent=1 // pred_check
      _
    $region23: #{fwd.1} parent=1 // pred_check_branch
      %1602 = sbr.rel (0) target = $region25
    $region24: #{fwd.1} parent=1 // pred_region
      %1603 = dma.done [#allocation3], 32
    $region25: #{fwd.1} parent=1 // pred_fallthru
      _
    %1604 = vsyncpa [#allocation3], 1

</llo_original>
